<compile_context>
chip_gen: v7x
topology: tpu7x:2x2x1
jax: 0.10.0
libtpu: 0.0.40
codegen_flags: <defaults>
</compile_context>

<pallas_src>
import functools
import math

import jax
import jax.numpy as jnp
from jax.experimental import pallas as pl
from jax.experimental.pallas import tpu as pltpu


def _round_up(x, m):
    return (x + m - 1) // m * m


def _layernorm_f32(x, gamma, beta, eps):
    mean = jnp.mean(x, axis=-1, keepdims=True)
    var = jnp.mean((x - mean) ** 2, axis=-1, keepdims=True)
    return (x - mean) * jax.lax.rsqrt(var + eps) * gamma + beta


def _vmem_limit_bytes():
    # ~75% of per-core VMEM: ~96 MiB on v5e/v6e (128 MiB), ~48 MiB on v7x (64 MiB).
    cap = 64 * 2 ** 20
    try:
        info = pltpu.get_tpu_info()
        cap = int(getattr(info, "vmem_capacity_bytes", None)
                  or getattr(info, "vmem_size_bytes", None) or cap)
    except Exception:
        pass  # conservative default works on every generation
    return int(cap * 3 // 4)


# --------------------------------------------------------------------------------------
# Kernel 1: pre-LN K/V projection, written head-major; K pre-transposed to (nh, hd, S).
# --------------------------------------------------------------------------------------
def _kv_proj_kernel(x_ref, ln_g_ref, ln_b_ref, wk_ref, bk_ref, wv_ref, bv_ref,
                    k_ref, v_ref, *, num_heads, eps):
    TS, H = x_ref.shape
    hd = H // num_heads
    xn = _layernorm_f32(x_ref[...].astype(jnp.float32), ln_g_ref[...], ln_b_ref[...],
                        eps).astype(jnp.bfloat16)
    k = jnp.dot(xn, wk_ref[...], preferred_element_type=jnp.float32) + bk_ref[...]
    v = jnp.dot(xn, wv_ref[...], preferred_element_type=jnp.float32) + bv_ref[...]
    # One transpose per sequence tile, amortized over every query tile that reads it.
    # K kept S-lane-dense so the score matmul needs no per-q-tile relayout.
    k_ref[...] = k.T.reshape(num_heads, hd, TS).astype(jnp.bfloat16)
    v_ref[...] = jnp.transpose(v.reshape(TS, num_heads, hd), (1, 0, 2)).astype(jnp.bfloat16)


# --------------------------------------------------------------------------------------
# Kernel 2: fused flash attention (online softmax over KV chunks) + out-proj + GELU FFN.
# Grid: (B, S/TQ, S/TK); accumulators live in VMEM scratch across the innermost kv axis.
# --------------------------------------------------------------------------------------
def _attn_ffn_kernel(x_ref, mask_ref, k_ref, v_ref,
                     ln1_g_ref, ln1_b_ref, wq_ref, bq_ref, wo_ref, bo_ref,
                     ln2_g_ref, ln2_b_ref, w1_ref, b1_ref, w2_ref, b2_ref,
                     out_ref,
                     q_scratch, m_scratch, l_scratch, acc_scratch,
                     *, num_heads, eps):
    q_blk = pl.program_id(1)
    kv_blk = pl.program_id(2)
    n_kv = pl.num_programs(2)
    TQ, H = x_ref.shape
    hd = H // num_heads
    TK = k_ref.shape[-1]

    # ---- once per (b, q) tile: project Q (pre-LN; 1/sqrt(hd) pre-folded into Wq/bq),
    #      reset the flash accumulators.
    @pl.when(kv_blk == 0)
    def _():
        xn1 = _layernorm_f32(x_ref[...].astype(jnp.float32), ln1_g_ref[...],
                             ln1_b_ref[...], eps).astype(jnp.bfloat16)
        q = jnp.dot(xn1, wq_ref[...], preferred_element_type=jnp.float32) + bq_ref[...]
        q_scratch[...] = jnp.transpose(
            q.reshape(TQ, num_heads, hd), (1, 0, 2)).astype(jnp.bfloat16)
        m_scratch[...] = jnp.full(m_scratch.shape, -jnp.inf, dtype=jnp.float32)
        l_scratch[...] = jnp.zeros(l_scratch.shape, dtype=jnp.float32)
        acc_scratch[...] = jnp.zeros(acc_scratch.shape, dtype=jnp.float32)

    # ---- online-softmax update for this KV chunk; skip chunks that are entirely in
    #      the causal future of this query tile (chunk 0 is never skipped).
    @pl.when(kv_blk * TK < (q_blk + 1) * TQ)
    def _():
        # fused causal + padding-key bias, kept in f32 (-1e9 would saturate bf16)
        pad_bias = (mask_ref[...].astype(jnp.float32) - 1.0) * 1e9            # (1, TK)
        q_pos = q_blk * TQ + jax.lax.broadcasted_iota(jnp.int32, (TQ, TK), 0)
        k_pos = kv_blk * TK + jax.lax.broadcasted_iota(jnp.int32, (TQ, TK), 1)
        bias = jnp.where(k_pos <= q_pos, pad_bias, -1e9)                      # (TQ, TK)

        s = jnp.einsum('hqd,hdk->hqk', q_scratch[...], k_ref[...],
                       preferred_element_type=jnp.float32) + bias[None]       # (nh,TQ,TK)
        m_prev = m_scratch[...]
        m_new = jnp.maximum(m_prev, jnp.max(s, axis=-1, keepdims=True))
        alpha = jnp.exp(m_prev - m_new)
        p = jnp.exp(s - m_new)
        l_scratch[...] = alpha * l_scratch[...] + jnp.sum(p, axis=-1, keepdims=True)
        acc_scratch[...] = alpha * acc_scratch[...] + jnp.einsum(
            'hqk,hkd->hqd', p.astype(jnp.bfloat16), v_ref[...],
            preferred_element_type=jnp.float32)
        m_scratch[...] = m_new

    # ---- once per (b, q) tile, after the last KV chunk: normalize, output projection,
    #      residual, pre-LN GELU FFN, residual, store.
    @pl.when(kv_blk == n_kv - 1)
    def _():
        ctx = acc_scratch[...] * pl.reciprocal(l_scratch[...], approx=True)   # (nh,TQ,hd)
        # TODO(synk): the (nh,TQ,hd)->(TQ,H) relayout could be avoided by accumulating
        #             per-head (TQ,hd)@(hd,H) products, but that underfills the 256-deep
        #             MXU on v6e/v7x; keep the full-depth Wo matmul instead.
        ctx = jnp.transpose(ctx, (1, 0, 2)).reshape(TQ, H).astype(jnp.bfloat16)
        attn_out = jnp.dot(ctx, wo_ref[...], preferred_element_type=jnp.float32) + bo_ref[...]

        x1 = x_ref[...].astype(jnp.float32) + attn_out                        # connect_depth

        xn2 = _layernorm_f32(x1, ln2_g_ref[...], ln2_b_ref[...], eps).astype(jnp.bfloat16)
        h1 = jnp.dot(xn2, w1_ref[...], preferred_element_type=jnp.float32) + b1_ref[...]
        h1 = jax.nn.gelu(h1, approximate=True).astype(jnp.bfloat16)           # tanh GELU (EUP)
        ffn_out = jnp.dot(h1, w2_ref[...], preferred_element_type=jnp.float32) + b2_ref[...]

        out_ref[...] = (x1 + ffn_out).astype(out_ref.dtype)


# --------------------------------------------------------------------------------------
# Wrapper: mirrors TransformerBlock.forward -> (output, past_kv, layer_state, aux_loss).
# --------------------------------------------------------------------------------------
def transformer_block(x, attention_mask, params, *, num_heads=4, eps=1e-5,
                      tq=None, tk=None):
    B, S, H = x.shape
    Ff = params["w1"].shape[1]
    assert H % num_heads == 0
    hd = H // num_heads
    scale = 1.0 / math.sqrt(hd)

    if attention_mask is None:
        attention_mask = jnp.ones((B, 1, S), jnp.float32)

    # ---- sequence tiling: pad S so both the query tile and the KV chunk divide it ----
    if S <= 128:
        S_pad = _round_up(S, 8)
        TQ = tq or S_pad
        TK = tk or S_pad
    else:
        TQ = tq or 128      # TODO(synk): sweep TQ=256 on v6e (128 MiB VMEM, 256-wide MXU)
        S_pad = _round_up(S, TQ)
        TK = tk or (512 if S_pad % 512 == 0 else 256 if S_pad % 256 == 0 else TQ)
    n_q = S_pad // TQ
    n_kv = S_pad // TK

    mask_f32 = attention_mask.astype(jnp.float32)
    if S_pad != S:
        # padded queries are sliced off at the end; padded keys are masked (mask pads = 0)
        x_in = jnp.pad(x, ((0, 0), (0, S_pad - S), (0, 0)))
        mask_in = jnp.pad(mask_f32, ((0, 0), (0, 0), (0, S_pad - S)))
    else:
        x_in, mask_in = x, mask_f32

    # ---- weights: MXU operands in bf16; softmax scale folded into Wq/bq host-side ----
    # TODO(synk): on v5e consider bf16 activations at the call boundary to halve HBM traffic.
    wq = (params["wq"] * scale).astype(jnp.bfloat16)
    bq = params["bq"] * scale
    wk = params["wk"].astype(jnp.bfloat16)
    wv = params["wv"].astype(jnp.bfloat16)
    wo = params["wo"].astype(jnp.bfloat16)
    w1 = params["w1"].astype(jnp.bfloat16)
    w2 = params["w2"].astype(jnp.bfloat16)

    vmem_limit = _vmem_limit_bytes()

    def run(single_buffer_weights):
        def const(shape):
            kw = ({"pipeline_mode": pl.Buffered(buffer_count=1)}
                  if single_buffer_weights else {})
            return pl.BlockSpec(shape, lambda *_: (0,) * len(shape), **kw)

        # ---- phase 1: head-major K/V for the whole (padded) sequence -----------------
        kv_kernel = functools.partial(_kv_proj_kernel, num_heads=num_heads, eps=eps)
        k_hm, v_hm = pl.pallas_call(
            kv_kernel,
            out_shape=(jax.ShapeDtypeStruct((B, num_heads, hd, S_pad), jnp.bfloat16),
                       jax.ShapeDtypeStruct((B, num_heads, S_pad, hd), jnp.bfloat16)),
            grid=(B, n_q),
            in_specs=[
                pl.BlockSpec((None, TQ, H), lambda b, s: (b, s, 0)),
                const((1, H)), const((1, H)),                    # ln1 gamma / beta
                const((H, H)), const((1, H)),                    # Wk, bk
                const((H, H)), const((1, H)),                    # Wv, bv
            ],
            out_specs=(
                pl.BlockSpec((None, num_heads, hd, TQ), lambda b, s: (b, 0, 0, s)),
                pl.BlockSpec((None, num_heads, TQ, hd), lambda b, s: (b, 0, s, 0)),
            ),
            compiler_params=pltpu.CompilerParams(
                dimension_semantics=("parallel", "parallel"),
                vmem_limit_bytes=vmem_limit),
        )(x_in, params["ln1_g"], params["ln1_b"], wk, params["bk"], wv, params["bv"])

        # ---- phase 2: flash attention + output projection + FFN, fused per q tile ----
        # TODO(synk): on v7x with very large H*Ff, stream W1/W2 over a K-tiled reduction
        #             axis (pltpu.emit_pipeline) instead of keeping them resident.
        kernel = functools.partial(_attn_ffn_kernel, num_heads=num_heads, eps=eps)
        out = pl.pallas_call(
            kernel,
            out_shape=jax.ShapeDtypeStruct((B, S_pad, H), x.dtype),
            grid=(B, n_q, n_kv),
            in_specs=[
                pl.BlockSpec((None, TQ, H), lambda b, q, kv: (b, q, 0)),          # x tile
                pl.BlockSpec((None, 1, TK), lambda b, q, kv: (b, 0, kv)),          # key mask
                pl.BlockSpec((None, num_heads, hd, TK), lambda b, q, kv: (b, 0, 0, kv)),
                pl.BlockSpec((None, num_heads, TK, hd), lambda b, q, kv: (b, 0, kv, 0)),
                const((1, H)), const((1, H)),                    # ln1 gamma / beta
                const((H, H)), const((1, H)),                    # Wq (pre-scaled), bq
                const((H, H)), const((1, H)),                    # Wo, bo
                const((1, H)), const((1, H)),                    # ln2 gamma / beta
                const((H, Ff)), const((1, Ff)),                  # W1, b1
                const((Ff, H)), const((1, H)),                   # W2, b2
            ],
            out_specs=pl.BlockSpec((None, TQ, H), lambda b, q, kv: (b, q, 0)),
            scratch_shapes=[
                pltpu.VMEM((num_heads, TQ, hd), jnp.bfloat16),   # Q, head-major
                pltpu.VMEM((num_heads, TQ, 1), jnp.float32),     # running max
                pltpu.VMEM((num_heads, TQ, 1), jnp.float32),     # running sum
                pltpu.VMEM((num_heads, TQ, hd), jnp.float32),    # context accumulator
            ],
            compiler_params=pltpu.CompilerParams(
                dimension_semantics=("parallel", "parallel", "arbitrary"),
                vmem_limit_bytes=vmem_limit),
        )(x_in, mask_in,
          k_hm, v_hm,
          params["ln1_g"], params["ln1_b"], wq, bq, wo, params["bo"],
          params["ln2_g"], params["ln2_b"], w1, params["b1"], w2, params["b2"])
        return out

    try:
        out_pad = run(single_buffer_weights=True)
    except Exception:
        # pipeline_mode=pl.Buffered(1) unavailable in this jax build: fall back to the
        # default double-buffered constant blocks (identical numerics).
        out_pad = run(single_buffer_weights=False)

    out = out_pad[:, :S, :] if S_pad != S else out_pad
    aux_loss = jnp.float32(0.0)
    # TODO(synk): past_key_values caching, norm_scaling (use_scaler) and router_weights
    #             gating are registry/config-dependent and not exercised here.
    return out, None, None, aux_loss


# --------------------------------------------------------------------------------------
# Pure-JAX reference (f32 weights) for a sanity check of the fused kernel.
# --------------------------------------------------------------------------------------
def _reference(x, mask, params, num_heads, eps):
    B, S, H = x.shape
    hd = H // num_heads

    def ln(v, g, b):
        mu = v.mean(-1, keepdims=True)
        var = ((v - mu) ** 2).mean(-1, keepdims=True)
        return (v - mu) * jax.lax.rsqrt(var + eps) * g + b

    xn = ln(x, params["ln1_g"], params["ln1_b"])
    q = (xn @ params["wq"] + params["bq"]) / math.sqrt(hd)
    k = xn @ params["wk"] + params["bk"]
    v = xn @ params["wv"] + params["bv"]
    q = q.reshape(B, S, num_heads, hd).transpose(0, 2, 1, 3)
    k = k.reshape(B, S, num_heads, hd).transpose(0, 2, 1, 3)
    v = v.reshape(B, S, num_heads, hd).transpose(0, 2, 1, 3)
    s = jnp.einsum('bhqd,bhkd->bhqk', q, k)
    causal = jnp.tril(jnp.ones((S, S), bool))[None, None]
    keep = jnp.logical_and(causal, mask[:, :, None, :] > 0.5)
    s = jnp.where(keep, s, -1e9)
    p = jax.nn.softmax(s, axis=-1)
    ctx = jnp.einsum('bhqk,bhkd->bhqd', p, v).transpose(0, 2, 1, 3).reshape(B, S, H)
    x1 = x + ctx @ params["wo"] + params["bo"]
    xn2 = ln(x1, params["ln2_g"], params["ln2_b"])
    h1 = jax.nn.gelu(xn2 @ params["w1"] + params["b1"], approximate=True)
    return x1 + h1 @ params["w2"] + params["b2"]


def init_params(key, hidden, ffn_dim):
    ks = jax.random.split(key, 6)
    std = 0.02
    return {
        "ln1_g": jnp.ones((1, hidden), jnp.float32),
        "ln1_b": jnp.zeros((1, hidden), jnp.float32),
        "wq": std * jax.random.normal(ks[0], (hidden, hidden), jnp.float32),
        "bq": jnp.zeros((1, hidden), jnp.float32),
        "wk": std * jax.random.normal(ks[1], (hidden, hidden), jnp.float32),
        "bk": jnp.zeros((1, hidden), jnp.float32),
        "wv": std * jax.random.normal(ks[2], (hidden, hidden), jnp.float32),
        "bv": jnp.zeros((1, hidden), jnp.float32),
        "wo": std * jax.random.normal(ks[3], (hidden, hidden), jnp.float32),
        "bo": jnp.zeros((1, hidden), jnp.float32),
        "ln2_g": jnp.ones((1, hidden), jnp.float32),
        "ln2_b": jnp.zeros((1, hidden), jnp.float32),
        "w1": std * jax.random.normal(ks[4], (hidden, ffn_dim), jnp.float32),
        "b1": jnp.zeros((1, ffn_dim), jnp.float32),
        "w2": std * jax.random.normal(ks[5], (ffn_dim, hidden), jnp.float32),
        "b2": jnp.zeros((1, hidden), jnp.float32),
    }


if __name__ == "__main__":
    B, S, H = 2, 8, 32
    NUM_HEADS = 4
    FFN = 4 * H

    key = jax.random.PRNGKey(0)
    k_x, k_p = jax.random.split(key)
    x = jax.random.normal(k_x, (B, S, H), jnp.float32)
    # mask: all tokens valid except the last position of batch element 1 (padding)
    attention_mask = jnp.ones((B, 1, S), jnp.float32).at[1, 0, S - 1].set(0.0)
    params = init_params(k_p, H, FFN)

    out, past_kv, state, aux_loss = transformer_block(
        x, attention_mask, params, num_heads=NUM_HEADS, eps=1e-5)
    out = jax.block_until_ready(out)

    assert out.shape == (B, S, H)
    assert bool(jnp.all(jnp.isfinite(out)))
    ref = _reference(x, attention_mask, params, NUM_HEADS, 1e-5)
    assert float(jnp.max(jnp.abs(out - ref))) < 3e-2  # bf16 weights + approx reciprocal
    print("KERNEL_OK")
</pallas_src>

<mosaic_0001>
module attributes {stable_mosaic.version = 11 : i64} {
  func.func @_kv_proj_kernel(%arg0: i32, %arg1: i32, %arg2: memref<1x8x32xf32, #tpu.memory_space<vmem>>, %arg3: memref<1x32xf32, #tpu.memory_space<vmem>>, %arg4: memref<1x32xf32, #tpu.memory_space<vmem>>, %arg5: memref<32x32xbf16, #tpu.memory_space<vmem>>, %arg6: memref<1x32xf32, #tpu.memory_space<vmem>>, %arg7: memref<32x32xbf16, #tpu.memory_space<vmem>>, %arg8: memref<1x32xf32, #tpu.memory_space<vmem>>, %arg9: memref<1x4x8x8xbf16, #tpu.memory_space<vmem>>, %arg10: memref<1x4x8x8xbf16, #tpu.memory_space<vmem>>) attributes {dimension_semantics = [#tpu.dimension_semantics<parallel>, #tpu.dimension_semantics<parallel>], iteration_bounds = array<i64: 2, 1>, scalar_prefetch = 0 : i64, scratch_operands = 0 : i64, tpu.core_type = #tpu.core_type<tc>, window_params = [{transform_indices = @transform_0, window_bounds = array<i64: 1, 8, 32>}, {pipeline_mode = #tpu.pipeline_mode<synchronous>, transform_indices = @transform_1, window_bounds = array<i64: 1, 32>}, {pipeline_mode = #tpu.pipeline_mode<synchronous>, transform_indices = @transform_2, window_bounds = array<i64: 1, 32>}, {pipeline_mode = #tpu.pipeline_mode<synchronous>, transform_indices = @transform_3, window_bounds = array<i64: 32, 32>}, {pipeline_mode = #tpu.pipeline_mode<synchronous>, transform_indices = @transform_4, window_bounds = array<i64: 1, 32>}, {pipeline_mode = #tpu.pipeline_mode<synchronous>, transform_indices = @transform_5, window_bounds = array<i64: 32, 32>}, {pipeline_mode = #tpu.pipeline_mode<synchronous>, transform_indices = @transform_6, window_bounds = array<i64: 1, 32>}, {transform_indices = @transform_7, window_bounds = array<i64: 1, 4, 8, 8>}, {transform_indices = @transform_8, window_bounds = array<i64: 1, 4, 8, 8>}]} {
    %c0 = arith.constant 0 : index
    %c0_0 = arith.constant 0 : index
    %c0_1 = arith.constant 0 : index
    %0 = vector.load %arg2[%c0, %c0_0, %c0_1] : memref<1x8x32xf32, #tpu.memory_space<vmem>>, vector<1x8x32xf32>
    %1 = vector.shape_cast %0 : vector<1x8x32xf32> to vector<8x32xf32>
    %c0_2 = arith.constant 0 : index
    %c0_3 = arith.constant 0 : index
    %2 = vector.load %arg3[%c0_2, %c0_3] : memref<1x32xf32, #tpu.memory_space<vmem>>, vector<1x32xf32>
    %c0_4 = arith.constant 0 : index
    %c0_5 = arith.constant 0 : index
    %3 = vector.load %arg4[%c0_4, %c0_5] : memref<1x32xf32, #tpu.memory_space<vmem>>, vector<1x32xf32>
    %cst = arith.constant dense<0.000000e+00> : vector<8xf32>
    %4 = vector.multi_reduction <add>, %1, %cst [1] : vector<8x32xf32> to vector<8xf32>
    %5 = vector.shape_cast %4 : vector<8xf32> to vector<8x1xf32>
    %cst_6 = arith.constant 3.200000e+01 : f32
    %6 = vector.broadcast %cst_6 : f32 to vector<8x1xf32>
    %7 = arith.divf %5, %6 : vector<8x1xf32>
    %8 = vector.broadcast %7 : vector<8x1xf32> to vector<8x32xf32>
    %9 = arith.subf %1, %8 : vector<8x32xf32>
    %10 = arith.mulf %9, %9 : vector<8x32xf32>
    %cst_7 = arith.constant dense<0.000000e+00> : vector<8xf32>
    %11 = vector.multi_reduction <add>, %10, %cst_7 [1] : vector<8x32xf32> to vector<8xf32>
    %12 = vector.shape_cast %11 : vector<8xf32> to vector<8x1xf32>
    %cst_8 = arith.constant 3.200000e+01 : f32
    %13 = vector.broadcast %cst_8 : f32 to vector<8x1xf32>
    %14 = arith.divf %12, %13 : vector<8x1xf32>
    %15 = vector.broadcast %7 : vector<8x1xf32> to vector<8x32xf32>
    %16 = arith.subf %1, %15 : vector<8x32xf32>
    %cst_9 = arith.constant 9.99999974E-6 : f32
    %17 = vector.broadcast %cst_9 : f32 to vector<8x1xf32>
    %18 = arith.addf %14, %17 : vector<8x1xf32>
    %19 = math.rsqrt %18 : vector<8x1xf32>
    %20 = vector.broadcast %19 : vector<8x1xf32> to vector<8x32xf32>
    %21 = arith.mulf %16, %20 : vector<8x32xf32>
    %22 = vector.broadcast %2 : vector<1x32xf32> to vector<8x32xf32>
    %23 = arith.mulf %21, %22 : vector<8x32xf32>
    %24 = vector.broadcast %3 : vector<1x32xf32> to vector<8x32xf32>
    %25 = arith.addf %23, %24 : vector<8x32xf32>
    %26 = arith.truncf %25 : vector<8x32xf32> to vector<8x32xbf16>
    %c0_10 = arith.constant 0 : index
    %c0_11 = arith.constant 0 : index
    %27 = vector.load %arg5[%c0_10, %c0_11] : memref<32x32xbf16, #tpu.memory_space<vmem>>, vector<32x32xbf16>
    %cst_12 = arith.constant dense<0.000000e+00> : vector<8x32xf32>
    %28 = tpu.matmul %26, %27, %cst_12 {dimension_numbers = #tpu.dot_dimension_numbers<[1], [0], [0], [1], [0, 0, 1, 1], [], []>} : vector<8x32xbf16>, vector<32x32xbf16>, vector<8x32xf32> -> vector<8x32xf32>
    %c0_13 = arith.constant 0 : index
    %c0_14 = arith.constant 0 : index
    %29 = vector.load %arg6[%c0_13, %c0_14] : memref<1x32xf32, #tpu.memory_space<vmem>>, vector<1x32xf32>
    %30 = vector.broadcast %29 : vector<1x32xf32> to vector<8x32xf32>
    %31 = arith.addf %28, %30 : vector<8x32xf32>
    %c0_15 = arith.constant 0 : index
    %c0_16 = arith.constant 0 : index
    %32 = vector.load %arg7[%c0_15, %c0_16] : memref<32x32xbf16, #tpu.memory_space<vmem>>, vector<32x32xbf16>
    %cst_17 = arith.constant dense<0.000000e+00> : vector<8x32xf32>
    %33 = tpu.matmul %26, %32, %cst_17 {dimension_numbers = #tpu.dot_dimension_numbers<[1], [0], [0], [1], [0, 0, 1, 1], [], []>} : vector<8x32xbf16>, vector<32x32xbf16>, vector<8x32xf32> -> vector<8x32xf32>
    %c0_18 = arith.constant 0 : index
    %c0_19 = arith.constant 0 : index
    %34 = vector.load %arg8[%c0_18, %c0_19] : memref<1x32xf32, #tpu.memory_space<vmem>>, vector<1x32xf32>
    %35 = vector.broadcast %34 : vector<1x32xf32> to vector<8x32xf32>
    %36 = arith.addf %33, %35 : vector<8x32xf32>
    %37 = tpu.transpose %31, [1, 0] : vector<8x32xf32> -> vector<32x8xf32>
    %38 = vector.shape_cast %37 : vector<32x8xf32> to vector<4x8x8xf32>
    %39 = arith.truncf %38 : vector<4x8x8xf32> to vector<4x8x8xbf16>
    %c0_20 = arith.constant 0 : index
    %c0_21 = arith.constant 0 : index
    %c0_22 = arith.constant 0 : index
    %c0_23 = arith.constant 0 : index
    %40 = vector.load %arg9[%c0_20, %c0_21, %c0_22, %c0_23] : memref<1x4x8x8xbf16, #tpu.memory_space<vmem>>, vector<1x4x8x8xbf16>
    %41 = vector.shape_cast %40 : vector<1x4x8x8xbf16> to vector<4x8x8xbf16>
    %42 = vector.shape_cast %39 : vector<4x8x8xbf16> to vector<1x4x8x8xbf16>
    tpu.vector_store %arg9[%c0_20, %c0_21, %c0_22, %c0_23], %42 {strides = array<i32>} : memref<1x4x8x8xbf16, #tpu.memory_space<vmem>>, vector<1x4x8x8xbf16>,
    %43 = vector.shape_cast %36 : vector<8x32xf32> to vector<8x4x8xf32>
    %44 = tpu.transpose %43, [1, 0, 2] : vector<8x4x8xf32> -> vector<4x8x8xf32>
    %45 = arith.truncf %44 : vector<4x8x8xf32> to vector<4x8x8xbf16>
    %c0_24 = arith.constant 0 : index
    %c0_25 = arith.constant 0 : index
    %c0_26 = arith.constant 0 : index
    %c0_27 = arith.constant 0 : index
    %46 = vector.load %arg10[%c0_24, %c0_25, %c0_26, %c0_27] : memref<1x4x8x8xbf16, #tpu.memory_space<vmem>>, vector<1x4x8x8xbf16>
    %47 = vector.shape_cast %46 : vector<1x4x8x8xbf16> to vector<4x8x8xbf16>
    %48 = vector.shape_cast %45 : vector<4x8x8xbf16> to vector<1x4x8x8xbf16>
    tpu.vector_store %arg10[%c0_24, %c0_25, %c0_26, %c0_27], %48 {strides = array<i32>} : memref<1x4x8x8xbf16, #tpu.memory_space<vmem>>, vector<1x4x8x8xbf16>,
    return
  }
  func.func @transform_0(%arg0: i32, %arg1: i32) -> (i32, i32, i32) {
    %c0_i32 = arith.constant 0 : i32
    %c0_i32_0 = arith.constant 0 : i32
    return %arg0, %arg1, %c0_i32 : i32, i32, i32
  }
  func.func @transform_1(%arg0: i32, %arg1: i32) -> (i32, i32) {
    %c0_i32 = arith.constant 0 : i32
    %c0_i32_0 = arith.constant 0 : i32
    %c0_i32_1 = arith.constant 0 : i32
    return %c0_i32, %c0_i32_0 : i32, i32
  }
  func.func @transform_2(%arg0: i32, %arg1: i32) -> (i32, i32) {
    %c0_i32 = arith.constant 0 : i32
    %c0_i32_0 = arith.constant 0 : i32
    %c0_i32_1 = arith.constant 0 : i32
    return %c0_i32, %c0_i32_0 : i32, i32
  }
  func.func @transform_3(%arg0: i32, %arg1: i32) -> (i32, i32) {
    %c0_i32 = arith.constant 0 : i32
    %c0_i32_0 = arith.constant 0 : i32
    %c0_i32_1 = arith.constant 0 : i32
    return %c0_i32, %c0_i32_0 : i32, i32
  }
  func.func @transform_4(%arg0: i32, %arg1: i32) -> (i32, i32) {
    %c0_i32 = arith.constant 0 : i32
    %c0_i32_0 = arith.constant 0 : i32
    %c0_i32_1 = arith.constant 0 : i32
    return %c0_i32, %c0_i32_0 : i32, i32
  }
  func.func @transform_5(%arg0: i32, %arg1: i32) -> (i32, i32) {
    %c0_i32 = arith.constant 0 : i32
    %c0_i32_0 = arith.constant 0 : i32
    %c0_i32_1 = arith.constant 0 : i32
    return %c0_i32, %c0_i32_0 : i32, i32
  }
  func.func @transform_6(%arg0: i32, %arg1: i32) -> (i32, i32) {
    %c0_i32 = arith.constant 0 : i32
    %c0_i32_0 = arith.constant 0 : i32
    %c0_i32_1 = arith.constant 0 : i32
    return %c0_i32, %c0_i32_0 : i32, i32
  }
  func.func @transform_7(%arg0: i32, %arg1: i32) -> (i32, i32, i32, i32) {
    %c0_i32 = arith.constant 0 : i32
    %c0_i32_0 = arith.constant 0 : i32
    %c0_i32_1 = arith.constant 0 : i32
    return %arg0, %c0_i32, %c0_i32_0, %arg1 : i32, i32, i32, i32
  }
  func.func @transform_8(%arg0: i32, %arg1: i32) -> (i32, i32, i32, i32) {
    %c0_i32 = arith.constant 0 : i32
    %c0_i32_0 = arith.constant 0 : i32
    %c0_i32_1 = arith.constant 0 : i32
    return %arg0, %c0_i32, %arg1, %c0_i32_0 : i32, i32, i32, i32
  }
}

module attributes {stable_mosaic.version = 11 : i64} {
  func.func @_kv_proj_kernel(%arg0: i32, %arg1: i32, %arg2: memref<1x8x32xf32, #tpu.memory_space<vmem>>, %arg3: memref<1x32xf32, #tpu.memory_space<vmem>>, %arg4: memref<1x32xf32, #tpu.memory_space<vmem>>, %arg5: memref<32x32xbf16, #tpu.memory_space<vmem>>, %arg6: memref<1x32xf32, #tpu.memory_space<vmem>>, %arg7: memref<32x32xbf16, #tpu.memory_space<vmem>>, %arg8: memref<1x32xf32, #tpu.memory_space<vmem>>, %arg9: memref<1x4x8x8xbf16, #tpu.memory_space<vmem>>, %arg10: memref<1x4x8x8xbf16, #tpu.memory_space<vmem>>) attributes {dimension_semantics = [#tpu.dimension_semantics<parallel>, #tpu.dimension_semantics<parallel>], iteration_bounds = array<i64: 2, 1>, scalar_prefetch = 0 : i64, scratch_operands = 0 : i64, tpu.core_type = #tpu.core_type<tc>, window_params = [{transform_indices = @transform_0, window_bounds = array<i64: 1, 8, 32>}, {pipeline_mode = #tpu.pipeline_mode<synchronous>, transform_indices = @transform_1, window_bounds = array<i64: 1, 32>}, {pipeline_mode = #tpu.pipeline_mode<synchronous>, transform_indices = @transform_2, window_bounds = array<i64: 1, 32>}, {pipeline_mode = #tpu.pipeline_mode<synchronous>, transform_indices = @transform_3, window_bounds = array<i64: 32, 32>}, {pipeline_mode = #tpu.pipeline_mode<synchronous>, transform_indices = @transform_4, window_bounds = array<i64: 1, 32>}, {pipeline_mode = #tpu.pipeline_mode<synchronous>, transform_indices = @transform_5, window_bounds = array<i64: 32, 32>}, {pipeline_mode = #tpu.pipeline_mode<synchronous>, transform_indices = @transform_6, window_bounds = array<i64: 1, 32>}, {transform_indices = @transform_7, window_bounds = array<i64: 1, 4, 8, 8>}, {transform_indices = @transform_8, window_bounds = array<i64: 1, 4, 8, 8>}]} {
    %c0 = arith.constant 0 : index
    %c0_0 = arith.constant 0 : index
    %c0_1 = arith.constant 0 : index
    %0 = vector.load %arg2[%c0, %c0_0, %c0_1] : memref<1x8x32xf32, #tpu.memory_space<vmem>>, vector<1x8x32xf32>
    %1 = vector.shape_cast %0 : vector<1x8x32xf32> to vector<8x32xf32>
    %c0_2 = arith.constant 0 : index
    %c0_3 = arith.constant 0 : index
    %2 = vector.load %arg3[%c0_2, %c0_3] : memref<1x32xf32, #tpu.memory_space<vmem>>, vector<1x32xf32>
    %c0_4 = arith.constant 0 : index
    %c0_5 = arith.constant 0 : index
    %3 = vector.load %arg4[%c0_4, %c0_5] : memref<1x32xf32, #tpu.memory_space<vmem>>, vector<1x32xf32>
    %cst = arith.constant dense<0.000000e+00> : vector<8xf32>
    %4 = vector.multi_reduction <add>, %1, %cst [1] : vector<8x32xf32> to vector<8xf32>
    %5 = vector.shape_cast %4 : vector<8xf32> to vector<8x1xf32>
    %cst_6 = arith.constant 3.200000e+01 : f32
    %6 = vector.broadcast %cst_6 : f32 to vector<8x1xf32>
    %7 = arith.divf %5, %6 : vector<8x1xf32>
    %8 = vector.broadcast %7 : vector<8x1xf32> to vector<8x32xf32>
    %9 = arith.subf %1, %8 : vector<8x32xf32>
    %10 = arith.mulf %9, %9 : vector<8x32xf32>
    %cst_7 = arith.constant dense<0.000000e+00> : vector<8xf32>
    %11 = vector.multi_reduction <add>, %10, %cst_7 [1] : vector<8x32xf32> to vector<8xf32>
    %12 = vector.shape_cast %11 : vector<8xf32> to vector<8x1xf32>
    %cst_8 = arith.constant 3.200000e+01 : f32
    %13 = vector.broadcast %cst_8 : f32 to vector<8x1xf32>
    %14 = arith.divf %12, %13 : vector<8x1xf32>
    %15 = vector.broadcast %7 : vector<8x1xf32> to vector<8x32xf32>
    %16 = arith.subf %1, %15 : vector<8x32xf32>
    %cst_9 = arith.constant 9.99999974E-6 : f32
    %17 = vector.broadcast %cst_9 : f32 to vector<8x1xf32>
    %18 = arith.addf %14, %17 : vector<8x1xf32>
    %19 = math.rsqrt %18 : vector<8x1xf32>
    %20 = vector.broadcast %19 : vector<8x1xf32> to vector<8x32xf32>
    %21 = arith.mulf %16, %20 : vector<8x32xf32>
    %22 = vector.broadcast %2 : vector<1x32xf32> to vector<8x32xf32>
    %23 = arith.mulf %21, %22 : vector<8x32xf32>
    %24 = vector.broadcast %3 : vector<1x32xf32> to vector<8x32xf32>
    %25 = arith.addf %23, %24 : vector<8x32xf32>
    %26 = arith.truncf %25 : vector<8x32xf32> to vector<8x32xbf16>
    %c0_10 = arith.constant 0 : index
    %c0_11 = arith.constant 0 : index
    %27 = vector.load %arg5[%c0_10, %c0_11] : memref<32x32xbf16, #tpu.memory_space<vmem>>, vector<32x32xbf16>
    %cst_12 = arith.constant dense<0.000000e+00> : vector<8x32xf32>
    %28 = tpu.matmul %26, %27, %cst_12 {dimension_numbers = #tpu.dot_dimension_numbers<[1], [0], [0], [1], [0, 0, 1, 1], [], []>} : vector<8x32xbf16>, vector<32x32xbf16>, vector<8x32xf32> -> vector<8x32xf32>
    %c0_13 = arith.constant 0 : index
    %c0_14 = arith.constant 0 : index
    %29 = vector.load %arg6[%c0_13, %c0_14] : memref<1x32xf32, #tpu.memory_space<vmem>>, vector<1x32xf32>
    %30 = vector.broadcast %29 : vector<1x32xf32> to vector<8x32xf32>
    %31 = arith.addf %28, %30 : vector<8x32xf32>
    %c0_15 = arith.constant 0 : index
    %c0_16 = arith.constant 0 : index
    %32 = vector.load %arg7[%c0_15, %c0_16] : memref<32x32xbf16, #tpu.memory_space<vmem>>, vector<32x32xbf16>
    %cst_17 = arith.constant dense<0.000000e+00> : vector<8x32xf32>
    %33 = tpu.matmul %26, %32, %cst_17 {dimension_numbers = #tpu.dot_dimension_numbers<[1], [0], [0], [1], [0, 0, 1, 1], [], []>} : vector<8x32xbf16>, vector<32x32xbf16>, vector<8x32xf32> -> vector<8x32xf32>
    %c0_18 = arith.constant 0 : index
    %c0_19 = arith.constant 0 : index
    %34 = vector.load %arg8[%c0_18, %c0_19] : memref<1x32xf32, #tpu.memory_space<vmem>>, vector<1x32xf32>
    %35 = vector.broadcast %34 : vector<1x32xf32> to vector<8x32xf32>
    %36 = arith.addf %33, %35 : vector<8x32xf32>
    %37 = tpu.transpose %31, [1, 0] : vector<8x32xf32> -> vector<32x8xf32>
    %38 = vector.shape_cast %37 : vector<32x8xf32> to vector<4x8x8xf32>
    %39 = arith.truncf %38 : vector<4x8x8xf32> to vector<4x8x8xbf16>
    %c0_20 = arith.constant 0 : index
    %c0_21 = arith.constant 0 : index
    %c0_22 = arith.constant 0 : index
    %c0_23 = arith.constant 0 : index
    %40 = vector.load %arg9[%c0_20, %c0_21, %c0_22, %c0_23] : memref<1x4x8x8xbf16, #tpu.memory_space<vmem>>, vector<1x4x8x8xbf16>
    %41 = vector.shape_cast %40 : vector<1x4x8x8xbf16> to vector<4x8x8xbf16>
    %42 = vector.shape_cast %39 : vector<4x8x8xbf16> to vector<1x4x8x8xbf16>
    tpu.vector_store %arg9[%c0_20, %c0_21, %c0_22, %c0_23], %42 {strides = array<i32>} : memref<1x4x8x8xbf16, #tpu.memory_space<vmem>>, vector<1x4x8x8xbf16>,
    %43 = vector.shape_cast %36 : vector<8x32xf32> to vector<8x4x8xf32>
    %44 = tpu.transpose %43, [1, 0, 2] : vector<8x4x8xf32> -> vector<4x8x8xf32>
    %45 = arith.truncf %44 : vector<4x8x8xf32> to vector<4x8x8xbf16>
    %c0_24 = arith.constant 0 : index
    %c0_25 = arith.constant 0 : index
    %c0_26 = arith.constant 0 : index
    %c0_27 = arith.constant 0 : index
    %46 = vector.load %arg10[%c0_24, %c0_25, %c0_26, %c0_27] : memref<1x4x8x8xbf16, #tpu.memory_space<vmem>>, vector<1x4x8x8xbf16>
    %47 = vector.shape_cast %46 : vector<1x4x8x8xbf16> to vector<4x8x8xbf16>
    %48 = vector.shape_cast %45 : vector<4x8x8xbf16> to vector<1x4x8x8xbf16>
    tpu.vector_store %arg10[%c0_24, %c0_25, %c0_26, %c0_27], %48 {strides = array<i32>} : memref<1x4x8x8xbf16, #tpu.memory_space<vmem>>, vector<1x4x8x8xbf16>,
    return
  }
  func.func @transform_0(%arg0: i32, %arg1: i32) -> (i32, i32, i32) {
    %c0_i32 = arith.constant 0 : i32
    %c0_i32_0 = arith.constant 0 : i32
    return %arg0, %arg1, %c0_i32 : i32, i32, i32
  }
  func.func @transform_1(%arg0: i32, %arg1: i32) -> (i32, i32) {
    %c0_i32 = arith.constant 0 : i32
    %c0_i32_0 = arith.constant 0 : i32
    %c0_i32_1 = arith.constant 0 : i32
    return %c0_i32, %c0_i32_0 : i32, i32
  }
  func.func @transform_2(%arg0: i32, %arg1: i32) -> (i32, i32) {
    %c0_i32 = arith.constant 0 : i32
    %c0_i32_0 = arith.constant 0 : i32
    %c0_i32_1 = arith.constant 0 : i32
    return %c0_i32, %c0_i32_0 : i32, i32
  }
  func.func @transform_3(%arg0: i32, %arg1: i32) -> (i32, i32) {
    %c0_i32 = arith.constant 0 : i32
    %c0_i32_0 = arith.constant 0 : i32
    %c0_i32_1 = arith.constant 0 : i32
    return %c0_i32, %c0_i32_0 : i32, i32
  }
  func.func @transform_4(%arg0: i32, %arg1: i32) -> (i32, i32) {
    %c0_i32 = arith.constant 0 : i32
    %c0_i32_0 = arith.constant 0 : i32
    %c0_i32_1 = arith.constant 0 : i32
    return %c0_i32, %c0_i32_0 : i32, i32
  }
  func.func @transform_5(%arg0: i32, %arg1: i32) -> (i32, i32) {
    %c0_i32 = arith.constant 0 : i32
    %c0_i32_0 = arith.constant 0 : i32
    %c0_i32_1 = arith.constant 0 : i32
    return %c0_i32, %c0_i32_0 : i32, i32
  }
  func.func @transform_6(%arg0: i32, %arg1: i32) -> (i32, i32) {
    %c0_i32 = arith.constant 0 : i32
    %c0_i32_0 = arith.constant 0 : i32
    %c0_i32_1 = arith.constant 0 : i32
    return %c0_i32, %c0_i32_0 : i32, i32
  }
  func.func @transform_7(%arg0: i32, %arg1: i32) -> (i32, i32, i32, i32) {
    %c0_i32 = arith.constant 0 : i32
    %c0_i32_0 = arith.constant 0 : i32
    %c0_i32_1 = arith.constant 0 : i32
    return %arg0, %c0_i32, %c0_i32_0, %arg1 : i32, i32, i32, i32
  }
  func.func @transform_8(%arg0: i32, %arg1: i32) -> (i32, i32, i32, i32) {
    %c0_i32 = arith.constant 0 : i32
    %c0_i32_0 = arith.constant 0 : i32
    %c0_i32_1 = arith.constant 0 : i32
    return %arg0, %c0_i32, %arg1, %c0_i32_0 : i32, i32, i32, i32
  }
}

</mosaic_0001>

<llo_original>
// kernel: tpu_custom_call.1
$region0: #{tpu_custom_call.1}
  #allocation0 [shape = 'u32[]', space=smem, size = 0x4, offset = 0x4, fixed_abs, tag = 'smem constant byte address 0x4 - core index']
  #allocation1 [shape = 'u32[144,128]{1,0:T(1,128)}', space=vmem, size = 0x12000, scoped, tag = 'internal scratch']
  %s0 = inlined_call_operand.hbm [shape: f32[2,8,32], index: 0, kind: input, shape index: {}]
  %s1 = inlined_call_operand.vmem [shape: f32[1,32], index: 1, kind: input, shape index: {}]
  %s2 = inlined_call_operand.vmem [shape: f32[1,32], index: 2, kind: input, shape index: {}]
  %s3 = inlined_call_operand.hbm [shape: bf16[32,32], index: 3, kind: input, shape index: {}]
  %s4 = inlined_call_operand.hbm [shape: f32[1,32], index: 4, kind: input, shape index: {}]
  %s5 = inlined_call_operand.vmem [shape: bf16[32,32], index: 5, kind: input, shape index: {}]
  %s6 = inlined_call_operand.vmem [shape: f32[1,32], index: 6, kind: input, shape index: {}]
  %s7 = inlined_call_operand.hbm [shape: bf16[2,4,8,8], index: 7, kind: output, shape index: {0}]
  %s8 = inlined_call_operand.hbm [shape: bf16[2,4,8,8], index: 8, kind: output, shape index: {1}]
  %9 = xla_tuple %s7, %s8
  %s10 = sld [smem:[#allocation0]]
  $region81: #{tpu_custom_call.1} parent=0
    _
  %s12 = ssub.s32 1, %s10
  %s13 = scalar_select 0, %s12, %s10
  $region1: #{tpu_custom_call.1} parent=0
    #allocation2 [shape = 'u8[8192]{0}', space=vmem, size = 0x2000, scoped, tag = 'input window, operand 0']
    #allocation3 [shape = 's32[2]{0}', space=sflag, size = 0x8, scoped, tag = 'scoped memory for tpu_custom_call.1']
    #allocation4 [shape = 's32[2]{0}', space=sflag, size = 0x8, scoped, tag = 'scoped memory for tpu_custom_call.1']
    #allocation5 [shape = 'u8[8192]{0}', space=vmem, size = 0x2000, scoped, tag = 'input window, operand 3, single buffered']
    #allocation6 [shape = 's32[1]{0}', space=sflag, size = 0x4, scoped, tag = 'scoped memory for tpu_custom_call.1']
    #allocation7 [shape = 'u8[512]{0}', space=vmem, size = 0x400, scoped, tag = 'input window, operand 4, single buffered']
    #allocation8 [shape = 'u8[16384]{0}', space=vmem, size = 0x4000, scoped, tag = 'output window, operand 0']
    #allocation9 [shape = 'u8[16384]{0}', space=vmem, size = 0x4000, scoped, tag = 'output window, operand 1']
    #allocation10 [shape = 's32[2]{0}', space=sflag, size = 0x8, scoped, tag = 'scoped memory for tpu_custom_call.1']
    %14 = vsyncpa [#allocation3], 0
    %s15 = scalar_lea.sflag [#allocation3], 1
    %16 = vsyncpa %s15, 0
    %17 = vsyncpa [#allocation6], 0
    %18 = vsyncpa [#allocation4], 0
    %s19 = scalar_lea.sflag [#allocation4], 1
    %20 = vsyncpa %s19, 0
    %21 = vsyncpa [#allocation10], 0
    %s22 = scalar_lea.sflag [#allocation10], 1
    %23 = vsyncpa %s22, 0
    loop: start=0, step=1, limit=4
    $region2: #{tpu_custom_call.1} parent=1 // loop_pre_header
      _
    $region3: #{tpu_custom_call.1} parent=1 // loop_header
      %s25 = sphi 0, %s29
      %p26 = scmp.ge.s32.totalorder %s25, 4
      %s32 = sphi 0, %s44
      %s33 = sphi 0, %s40
      %s34 = sphi 0, %s32
      %s35 = sphi 0, %s33
      %s36 = sphi 0, %s34
      %s37 = sphi 0, %s35
      %s49 = sphi 0, %s51
      %s52 = sphi 0, %s49
      %s53 = sphi 0, %s52
      %s69 = sphi 0, %s53
      %s73 = sphi 0, %s73
      %s75 = sphi 0, %s73
      %s76 = sphi 0, %s75
      %s90 = sphi 0, %s76
      %s94 = sphi 0, %s94
      %s96 = sphi 0, %s94
      %s97 = sphi 0, %s96
      %s111 = sphi 0, %s97
      %s115 = sphi 0, %s115
      %s117 = sphi 0, %s115
      %s118 = sphi 0, %s117
      %s132 = sphi 0, %s118
      %s136 = sphi 0, %s136
      %s138 = sphi 0, %s136
      %s139 = sphi 0, %s138
      %s153 = sphi 0, %s139
      %s157 = sphi 0, %s157
      %s159 = sphi 0, %s157
      %s160 = sphi 0, %s159
      %s174 = sphi 0, %s160
      %s178 = sphi 0, %s178
      %s180 = sphi 0, %s178
      %s181 = sphi 0, %s180
      %s195 = sphi 0, %s181
      %s203 = sphi 0, %s205
      %s206 = sphi 0, %s203
      %s207 = sphi 0, %s206
      %s223 = sphi 0, %s207
      %s231 = sphi 0, %s233
      %s234 = sphi 0, %s231
      %s235 = sphi 0, %s234
      %s251 = sphi 0, %s235
    $region4: #{tpu_custom_call.1} parent=1 // loop_header_branch
      %28 = sbr.rel (%p26) target = $region8
    $region5: #{tpu_custom_call.1} parent=1 // loop_body
      %s30 = ssub.s32 %s25, 1
      %s31 = ssub.s32 %s25, 2
      %s38 = sadd.s32 1, %s33
      %p39 = scmp.ge.s32.totalorder %s38, 1
      %s40 = scalar_select %p39, 0, %s38
      %s41 = sadd.s32 1, %s32
      %s42 = scalar_select %p39, %s41, %s32
      %p43 = scmp.ge.s32.totalorder %s42, 2
      %s44 = scalar_select %p43, 0, %s42
      %s45 = ssub.s32 %s32, %s44
      %s46 = ssub.s32 %s33, %s40
      %s47 = sor.u32 %s45, %s46
      %p48 = scmp.eq.s32.totalorder %s47, 0
      %s50 = sadd.s32 %s49, 1
      %s51 = scalar_select %p48, %s49, %s50
      %p54 = pneg %p48
      %p55 = scmp.eq.s32.totalorder %s25, 1
      %p56 = por %p54, %p55
      %p57 = scmp.ne.s32.totalorder %s49, %s52
      %p58 = scmp.eq.s32.totalorder %s25, 0
      %p59 = por %p57, %p58
      %p60 = scmp.ne.s32.totalorder %s49, %s52
      %p61 = scmp.eq.s32.totalorder %s30, 1
      %p62 = por %p60, %p61
      %p63 = scmp.ne.s32.totalorder %s52, %s53
      %p64 = scmp.eq.s32.totalorder %s30, 0
      %p65 = por %p63, %p64
      %p66 = scmp.ne.s32.totalorder %s52, %s53
      %p67 = scmp.eq.s32.totalorder %s31, 1
      %p68 = por %p66, %p67
      %p70 = scmp.ne.s32.totalorder %s53, %s69
      %p71 = scmp.eq.s32.totalorder %s31, 0
      %p72 = por %p70, %p71
      %s74 = sadd.s32 %s73, 1
      %p77 = scmp.eq.s32.totalorder %s25, 1
      %p78 = scmp.ne.s32.totalorder %s73, %s75
      %p79 = scmp.eq.s32.totalorder %s25, 0
      %p80 = por %p78, %p79
      %p81 = scmp.ne.s32.totalorder %s73, %s75
      %p82 = scmp.eq.s32.totalorder %s30, 1
      %p83 = por %p81, %p82
      %p84 = scmp.ne.s32.totalorder %s75, %s76
      %p85 = scmp.eq.s32.totalorder %s30, 0
      %p86 = por %p84, %p85
      %p87 = scmp.ne.s32.totalorder %s75, %s76
      %p88 = scmp.eq.s32.totalorder %s31, 1
      %p89 = por %p87, %p88
      %p91 = scmp.ne.s32.totalorder %s76, %s90
      %p92 = scmp.eq.s32.totalorder %s31, 0
      %p93 = por %p91, %p92
      %s95 = sadd.s32 %s94, 1
      %p98 = scmp.eq.s32.totalorder %s25, 1
      %p99 = scmp.ne.s32.totalorder %s94, %s96
      %p100 = scmp.eq.s32.totalorder %s25, 0
      %p101 = por %p99, %p100
      %p102 = scmp.ne.s32.totalorder %s94, %s96
      %p103 = scmp.eq.s32.totalorder %s30, 1
      %p104 = por %p102, %p103
      %p105 = scmp.ne.s32.totalorder %s96, %s97
      %p106 = scmp.eq.s32.totalorder %s30, 0
      %p107 = por %p105, %p106
      %p108 = scmp.ne.s32.totalorder %s96, %s97
      %p109 = scmp.eq.s32.totalorder %s31, 1
      %p110 = por %p108, %p109
      %p112 = scmp.ne.s32.totalorder %s97, %s111
      %p113 = scmp.eq.s32.totalorder %s31, 0
      %p114 = por %p112, %p113
      %s116 = sadd.s32 %s115, 1
      %p119 = scmp.eq.s32.totalorder %s25, 1
      %p120 = scmp.ne.s32.totalorder %s115, %s117
      %p121 = scmp.eq.s32.totalorder %s25, 0
      %p122 = por %p120, %p121
      %p123 = scmp.ne.s32.totalorder %s115, %s117
      %p124 = scmp.eq.s32.totalorder %s30, 1
      %p125 = por %p123, %p124
      %p126 = scmp.ne.s32.totalorder %s117, %s118
      %p127 = scmp.eq.s32.totalorder %s30, 0
      %p128 = por %p126, %p127
      %p129 = scmp.ne.s32.totalorder %s117, %s118
      %p130 = scmp.eq.s32.totalorder %s31, 1
      %p131 = por %p129, %p130
      %p133 = scmp.ne.s32.totalorder %s118, %s132
      %p134 = scmp.eq.s32.totalorder %s31, 0
      %p135 = por %p133, %p134
      %s137 = sadd.s32 %s136, 1
      %p140 = scmp.eq.s32.totalorder %s25, 1
      %p141 = scmp.ne.s32.totalorder %s136, %s138
      %p142 = scmp.eq.s32.totalorder %s25, 0
      %p143 = por %p141, %p142
      %p144 = scmp.ne.s32.totalorder %s136, %s138
      %p145 = scmp.eq.s32.totalorder %s30, 1
      %p146 = por %p144, %p145
      %p147 = scmp.ne.s32.totalorder %s138, %s139
      %p148 = scmp.eq.s32.totalorder %s30, 0
      %p149 = por %p147, %p148
      %p150 = scmp.ne.s32.totalorder %s138, %s139
      %p151 = scmp.eq.s32.totalorder %s31, 1
      %p152 = por %p150, %p151
      %p154 = scmp.ne.s32.totalorder %s139, %s153
      %p155 = scmp.eq.s32.totalorder %s31, 0
      %p156 = por %p154, %p155
      %s158 = sadd.s32 %s157, 1
      %p161 = scmp.eq.s32.totalorder %s25, 1
      %p162 = scmp.ne.s32.totalorder %s157, %s159
      %p163 = scmp.eq.s32.totalorder %s25, 0
      %p164 = por %p162, %p163
      %p165 = scmp.ne.s32.totalorder %s157, %s159
      %p166 = scmp.eq.s32.totalorder %s30, 1
      %p167 = por %p165, %p166
      %p168 = scmp.ne.s32.totalorder %s159, %s160
      %p169 = scmp.eq.s32.totalorder %s30, 0
      %p170 = por %p168, %p169
      %p171 = scmp.ne.s32.totalorder %s159, %s160
      %p172 = scmp.eq.s32.totalorder %s31, 1
      %p173 = por %p171, %p172
      %p175 = scmp.ne.s32.totalorder %s160, %s174
      %p176 = scmp.eq.s32.totalorder %s31, 0
      %p177 = por %p175, %p176
      %s179 = sadd.s32 %s178, 1
      %p182 = scmp.eq.s32.totalorder %s25, 1
      %p183 = scmp.ne.s32.totalorder %s178, %s180
      %p184 = scmp.eq.s32.totalorder %s25, 0
      %p185 = por %p183, %p184
      %p186 = scmp.ne.s32.totalorder %s178, %s180
      %p187 = scmp.eq.s32.totalorder %s30, 1
      %p188 = por %p186, %p187
      %p189 = scmp.ne.s32.totalorder %s180, %s181
      %p190 = scmp.eq.s32.totalorder %s30, 0
      %p191 = por %p189, %p190
      %p192 = scmp.ne.s32.totalorder %s180, %s181
      %p193 = scmp.eq.s32.totalorder %s31, 1
      %p194 = por %p192, %p193
      %p196 = scmp.ne.s32.totalorder %s181, %s195
      %p197 = scmp.eq.s32.totalorder %s31, 0
      %p198 = por %p196, %p197
      %s199 = ssub.s32 %s32, %s44
      %s200 = ssub.s32 %s33, %s40
      %s201 = sor.u32 %s199, %s200
      %p202 = scmp.eq.s32.totalorder %s201, 0
      %s204 = sadd.s32 %s203, 1
      %s205 = scalar_select %p202, %s203, %s204
      %p208 = pneg %p202
      %p209 = scmp.eq.s32.totalorder %s25, 1
      %p210 = por %p208, %p209
      %p211 = scmp.ne.s32.totalorder %s203, %s206
      %p212 = scmp.eq.s32.totalorder %s25, 0
      %p213 = por %p211, %p212
      %p214 = scmp.ne.s32.totalorder %s203, %s206
      %p215 = scmp.eq.s32.totalorder %s30, 1
      %p216 = por %p214, %p215
      %p217 = scmp.ne.s32.totalorder %s206, %s207
      %p218 = scmp.eq.s32.totalorder %s30, 0
      %p219 = por %p217, %p218
      %p220 = scmp.ne.s32.totalorder %s206, %s207
      %p221 = scmp.eq.s32.totalorder %s31, 1
      %p222 = por %p220, %p221
      %p224 = scmp.ne.s32.totalorder %s207, %s223
      %p225 = scmp.eq.s32.totalorder %s31, 0
      %p226 = por %p224, %p225
      %s227 = ssub.s32 %s32, %s44
      %s228 = ssub.s32 %s33, %s40
      %s229 = sor.u32 %s227, %s228
      %p230 = scmp.eq.s32.totalorder %s229, 0
      %s232 = sadd.s32 %s231, 1
      %s233 = scalar_select %p230, %s231, %s232
      %p236 = pneg %p230
      %p237 = scmp.eq.s32.totalorder %s25, 1
      %p238 = por %p236, %p237
      %p239 = scmp.ne.s32.totalorder %s231, %s234
      %p240 = scmp.eq.s32.totalorder %s25, 0
      %p241 = por %p239, %p240
      %p242 = scmp.ne.s32.totalorder %s231, %s234
      %p243 = scmp.eq.s32.totalorder %s30, 1
      %p244 = por %p242, %p243
      %p245 = scmp.ne.s32.totalorder %s234, %s235
      %p246 = scmp.eq.s32.totalorder %s30, 0
      %p247 = por %p245, %p246
      %p248 = scmp.ne.s32.totalorder %s234, %s235
      %p249 = scmp.eq.s32.totalorder %s31, 1
      %p250 = por %p248, %p249
      %p252 = scmp.ne.s32.totalorder %s235, %s251
      %p253 = scmp.eq.s32.totalorder %s31, 0
      %p254 = por %p252, %p253
      %p255 = scmp.le.s32.totalorder 1, %s25
      %p256 = scmp.lt.s32.totalorder %s25, 3
      %p257 = pnand %p255, %p256
      %p258 = pneg %p257
      // Predicated region
      $region9: #{tpu_custom_call.1} parent=5 // pred_check
        _
      $region10: #{tpu_custom_call.1} parent=5 // pred_check_branch
        %260 = sbr.rel (%p257) target = $region12
      $region11: #{tpu_custom_call.1} parent=5 // pred_region
        %s261 = ssub.s32 %s25, 1
        // Predicated region
        $region13: #{tpu_custom_call.1} parent=11 // pred_check
          %p262 = pneg %p86
        $region14: #{tpu_custom_call.1} parent=11 // pred_check_branch
          %264 = sbr.rel (%p262) target = $region16
        $region15: #{tpu_custom_call.1} parent=11 // pred_region
          _
        $region16: #{tpu_custom_call.1} parent=11 // pred_fallthru
          _
        // Predicated region
        $region17: #{tpu_custom_call.1} parent=11 // pred_check
          %p265 = pneg %p107
        $region18: #{tpu_custom_call.1} parent=11 // pred_check_branch
          %267 = sbr.rel (%p265) target = $region20
        $region19: #{tpu_custom_call.1} parent=11 // pred_region
          _
        $region20: #{tpu_custom_call.1} parent=11 // pred_fallthru
          _
        // Predicated region
        $region21: #{tpu_custom_call.1} parent=11 // pred_check
          %p268 = pneg %p128
        $region22: #{tpu_custom_call.1} parent=11 // pred_check_branch
          %270 = sbr.rel (%p268) target = $region24
        $region23: #{tpu_custom_call.1} parent=11 // pred_region
          %s272 = ssub.s32 256, 256
          %273 = vsyncadd [#allocation6], %s272
          %s274 = sshll.u32 [#allocation5], 4
          %s275 = int_to_ptr.vmem [resolvable:$true] %s274
          %280 = dma.hbm_to_vmem [thread:$0]  %s3, 256, %s275, [#allocation6], 64, 64, 4
        $region24: #{tpu_custom_call.1} parent=11 // pred_fallthru
          _
        // Predicated region
        $region25: #{tpu_custom_call.1} parent=11 // pred_check
          %p281 = pneg %p149
        $region26: #{tpu_custom_call.1} parent=11 // pred_check_branch
          %283 = sbr.rel (%p281) target = $region28
        $region27: #{tpu_custom_call.1} parent=11 // pred_region
          %s285 = ssub.s32 16, 16
          %286 = vsyncadd [#allocation6], %s285
          %s288 = sshll.u32 [#allocation7], 4
          %s289 = int_to_ptr.vmem [resolvable:$true] %s288
          %291 = dma.hbm_to_vmem [thread:$0]  %s4, 16, %s289, [#allocation6]
        $region28: #{tpu_custom_call.1} parent=11 // pred_fallthru
          _
        // Predicated region
        $region29: #{tpu_custom_call.1} parent=11 // pred_check
          %p292 = pneg %p170
        $region30: #{tpu_custom_call.1} parent=11 // pred_check_branch
          %294 = sbr.rel (%p292) target = $region32
        $region31: #{tpu_custom_call.1} parent=11 // pred_region
          _
        $region32: #{tpu_custom_call.1} parent=11 // pred_fallthru
          _
        // Predicated region
        $region33: #{tpu_custom_call.1} parent=11 // pred_check
          %p295 = pneg %p191
        $region34: #{tpu_custom_call.1} parent=11 // pred_check_branch
          %297 = sbr.rel (%p295) target = $region36
        $region35: #{tpu_custom_call.1} parent=11 // pred_region
          _
        $region36: #{tpu_custom_call.1} parent=11 // pred_fallthru
          _
      $region12: #{tpu_custom_call.1} parent=5 // pred_fallthru
        _
      %p298 = scmp.lt.s32.totalorder %s25, 2
      // Predicated region
      $region37: #{tpu_custom_call.1} parent=5 // pred_check
        %p299 = pneg %p298
      $region38: #{tpu_custom_call.1} parent=5 // pred_check_branch
        %301 = sbr.rel (%p299) target = $region40
      $region39: #{tpu_custom_call.1} parent=5 // pred_region
        // Predicated region
        $region41: #{tpu_custom_call.1} parent=39 // pred_check
          %p302 = pneg %p59
        $region42: #{tpu_custom_call.1} parent=39 // pred_check_branch
          %304 = sbr.rel (%p302) target = $region44
        $region43: #{tpu_custom_call.1} parent=39 // pred_region
          %s305 = sand.u32 %s49, 1
          %s306 = scalar_lea.sflag [#allocation3], %s305
          %s307 = sand.u32 %s49, 1
          %s308 = smul.addr %s307, 8
          %s309 = scalar_lea.vmem [#allocation2], %s308
          %s311 = ssub.s32 128, 128
          %312 = vsyncadd %s306, %s311
          %s313 = sadd.s32 %s33, %s32
          %s314 = smul.addr %s313, 128
          %s315 = scalar_lea.hbm %s0, %s314
          %s317 = sshll.u32 %s309, 4
          %s318 = int_to_ptr.vmem [resolvable:$true] %s317
          %320 = dma.hbm_to_vmem [thread:$0]  %s315, 128, %s318, %s306
        $region44: #{tpu_custom_call.1} parent=39 // pred_fallthru
          _
      $region40: #{tpu_custom_call.1} parent=5 // pred_fallthru
        _
      %p321 = scmp.le.s32.totalorder 1, %s25
      %p322 = scmp.lt.s32.totalorder %s25, 3
      %p323 = pnand %p321, %p322
      %p324 = pneg %p323
      // Predicated region
      $region45: #{tpu_custom_call.1} parent=5 // pred_check
        _
      $region46: #{tpu_custom_call.1} parent=5 // pred_check_branch
        %326 = sbr.rel (%p323) target = $region48
      $region47: #{tpu_custom_call.1} parent=5 // pred_region
        %s327 = ssub.s32 %s25, 1
        %s328 = sand.u32 %s52, 1
        %s329 = scalar_lea.sflag [#allocation3], %s328
        %s330 = sand.u32 %s52, 1
        %s331 = smul.addr %s330, 8
        %s332 = scalar_lea.vmem [#allocation2], %s331
        // Predicated region
        $region49: #{tpu_custom_call.1} parent=47 // pred_check
          %p333 = pneg %p65
        $region50: #{tpu_custom_call.1} parent=47 // pred_check_branch
          %335 = sbr.rel (%p333) target = $region52
        $region51: #{tpu_custom_call.1} parent=47 // pred_region
          %336 = dma.done %s329, 128
        $region52: #{tpu_custom_call.1} parent=47 // pred_fallthru
          _
        // Predicated region
        $region53: #{tpu_custom_call.1} parent=47 // pred_check
          %p337 = pneg %p128
        $region54: #{tpu_custom_call.1} parent=47 // pred_check_branch
          %339 = sbr.rel (%p337) target = $region56
        $region55: #{tpu_custom_call.1} parent=47 // pred_region
          %340 = dma.done [#allocation6], 256
        $region56: #{tpu_custom_call.1} parent=47 // pred_fallthru
          _
        // Predicated region
        $region57: #{tpu_custom_call.1} parent=47 // pred_check
          %p341 = pneg %p149
        $region58: #{tpu_custom_call.1} parent=47 // pred_check_branch
          %343 = sbr.rel (%p341) target = $region60
        $region59: #{tpu_custom_call.1} parent=47 // pred_region
          %344 = dma.done [#allocation6], 16
        $region60: #{tpu_custom_call.1} parent=47 // pred_fallthru
          _
        %s345 = sand.u32 %s52, 1
        %s346 = scalar_lea.sflag [#allocation3], %s345
        %s347 = sand.u32 %s52, 1
        %s348 = smul.addr %s347, 8
        %s349 = scalar_lea.vmem [#allocation2], %s348
        %p350 = pneg %p65
        %p351 = pneg %p62
        %p352 = pneg %p86
        %p353 = pneg %p83
        %p354 = pneg %p107
        %p355 = pneg %p104
        %p356 = pneg %p128
        %p357 = pneg %p125
        %p358 = pneg %p149
        %p359 = pneg %p146
        %p360 = pneg %p170
        %p361 = pneg %p167
        %p362 = pneg %p191
        %p363 = pneg %p188
        %p364 = pneg %p219
        %p365 = pneg %p216
        %s366 = sand.u32 %s206, 1
        %s367 = scalar_lea.sflag [#allocation4], %s366
        %s368 = sand.u32 %s206, 1
        %s369 = smul.addr %s368, 16
        %s370 = scalar_lea.vmem [#allocation8], %s369
        %p371 = pneg %p247
        %p372 = pneg %p244
        %s373 = sand.u32 %s234, 1
        %s374 = scalar_lea.sflag [#allocation10], %s373
        %s375 = sand.u32 %s234, 1
        %s376 = smul.addr %s375, 16
        %s377 = scalar_lea.vmem [#allocation9], %s376
        %v379 = vld [vmem:[%s332] sm:$0xff]
        %v380 = vld [vmem:[%s1] sm:$0x1]
        %v381 = vld [vmem:[%s2] sm:$0x1]
        %vm382 = vcmask 261120
        %v383 = vsel %vm382, %v379, 0.0
        %384 = vadd.xlane.f32.xlu0 %v383
        %v385 = vpop.xlane.xlu0 %384
        %v386 = vrcp.pop 32.0
        %v387 = vmul.f32 %v385, %v386
        %v388 = vsub.f32 %v379, %v387
        %v389 = vmul.f32 %v388, %v388
        %v390 = vsel %vm382, %v389, 0.0
        %391 = vadd.xlane.f32.xlu0 %v390
        %v392 = vpop.xlane.xlu0 %391
        %v393 = vmul.f32 %v392, %v386
        %v394 = vadd.f32 %v393, 1e-05
        %v395 = vrsqrt.pop %v394
        %v396 = vmul.f32 %v388, %v395
        %v398 = vlaneseq
        %v399 = vshrl.u32 %v398, 7
        %v400 = vsub.s32 0, %v399
        %v401 = vrot.slane %v380, %v400
        %v403 = vmul.f32 %v396, %v401
        %v405 = vlaneseq
        %v406 = vshrl.u32 %v405, 7
        %v407 = vsub.s32 0, %v406
        %v408 = vrot.slane %v381, %v407
        %v410 = vadd.f32 %v403, %v408
        %v411 = vpack.c.bf16 %v410, %v410
        %v412 = vld [vmem:[#allocation5] sm:$0xf]
        %v413 = vld [vmem:[#allocation5 + $0x4] sm:$0xf]
        %v414 = vld [vmem:[#allocation5 + $0x8] sm:$0xf]
        %v415 = vld [vmem:[#allocation5 + $0xc] sm:$0xf]
        %v416 = vld [vmem:[#allocation7] sm:$0x1]
        %v418 = vlaneseq
        %v419 = vshrl.u32 %v418, 7
        %v420 = vsub.s32 0, %v419
        %v421 = vrot.slane %v416, %v420
        %v427 = vunpack.c.l.b16 %v412
        %v428 = vunpack.c.l.b16 %v413
        %v429 = vunpack.c.l.b16 %v414
        %v430 = vunpack.c.l.b16 %v415
        %v431 = vpack.c.b16 %v428, %v427
        %v432 = vpack.c.b16 %v430, %v429
        %v436 = vsel %vm382, %v411, 0
        %438 = vmatprep.subr.bf16.mxu0 0
        %439 = vmatpush1.bf16.msra.mxu0 %v431
        %440 = vmatprep.subr.bf16.mxu0 0
        %441 = vmatpush1.bf16.msra.mxu0 %v432
        %442 = vmatprep.subr.bf16.mxu0 0
        %443 = vmatpush1.bf16.msra.mxu0 0
        %444 = vmatprep.subr.bf16.mxu0 0
        %445 = vmatpush1.bf16.msra.mxu0 0
        %446 = vmatprep.subr.bf16.mxu0 0
        %447 = vmatpush1.bf16.msra.mxu0 0
        %448 = vmatprep.subr.bf16.mxu0 0
        %449 = vmatpush1.bf16.msra.mxu0 0
        %450 = vmatprep.subr.bf16.mxu0 0
        %451 = vmatpush1.bf16.msra.mxu0 0
        %452 = vmatprep.subr.bf16.mxu0 0
        %453 = vmatpush1.bf16.msra.mxu0 0
        %454 = vmatprep.subr.bf16.mxu0 0
        %455 = vmatpush1.bf16.msra.mxu0 0
        %456 = vmatprep.subr.bf16.mxu0 0
        %457 = vmatpush1.bf16.msra.mxu0 0
        %458 = vmatprep.subr.bf16.mxu0 0
        %459 = vmatpush1.bf16.msra.mxu0 0
        %460 = vmatprep.subr.bf16.mxu0 0
        %461 = vmatpush1.bf16.msra.mxu0 0
        %462 = vmatprep.subr.bf16.mxu0 0
        %463 = vmatpush1.bf16.msra.mxu0 0
        %464 = vmatprep.subr.bf16.mxu0 0
        %465 = vmatpush1.bf16.msra.mxu0 0
        %466 = vmatprep.subr.bf16.mxu0 0
        %467 = vmatpush1.bf16.msra.mxu0 0
        %468 = vmatprep.subr.bf16.mxu0 0
        %469 = vmatpush1.bf16.msra.mxu0 0
        %470 = vmatprep.mubr.bf16.mxu0 0
        %471 = vmatmul.mubr.bf16.gmra.mrb[0].mxu0 %v436
        %v472 = vpop.f32.mrb[0].mxu0
        %v473 = vadd.f32 %v421, %v472
        %v474 = vpop.f32.mrb[0].mxu0
        %v475 = vpop.f32.mrb[0].mxu0
        %v476 = vpop.f32.mrb[0].mxu0
        %477 = vdwg.mxu0
        %v478 = vld [vmem:[%s5] sm:$0xf]
        %v479 = vld [vmem:[%s5 + $0x4] sm:$0xf]
        %v480 = vld [vmem:[%s5 + $0x8] sm:$0xf]
        %v481 = vld [vmem:[%s5 + $0xc] sm:$0xf]
        %v482 = vld [vmem:[%s6] sm:$0x1]
        %v484 = vlaneseq
        %v485 = vshrl.u32 %v484, 7
        %v486 = vsub.s32 0, %v485
        %v487 = vrot.slane %v482, %v486
        %v493 = vunpack.c.l.b16 %v478
        %v494 = vunpack.c.l.b16 %v479
        %v495 = vunpack.c.l.b16 %v480
        %v496 = vunpack.c.l.b16 %v481
        %v497 = vpack.c.b16 %v494, %v493
        %v498 = vpack.c.b16 %v496, %v495
        %501 = vmatprep.subr.bf16.mxu0 0
        %502 = vmatpush1.bf16.msra.mxu0 %v497
        %503 = vmatprep.subr.bf16.mxu0 0
        %504 = vmatpush1.bf16.msra.mxu0 %v498
        %505 = vmatprep.subr.bf16.mxu0 0
        %506 = vmatpush1.bf16.msra.mxu0 0
        %507 = vmatprep.subr.bf16.mxu0 0
        %508 = vmatpush1.bf16.msra.mxu0 0
        %509 = vmatprep.subr.bf16.mxu0 0
        %510 = vmatpush1.bf16.msra.mxu0 0
        %511 = vmatprep.subr.bf16.mxu0 0
        %512 = vmatpush1.bf16.msra.mxu0 0
        %513 = vmatprep.subr.bf16.mxu0 0
        %514 = vmatpush1.bf16.msra.mxu0 0
        %515 = vmatprep.subr.bf16.mxu0 0
        %516 = vmatpush1.bf16.msra.mxu0 0
        %517 = vmatprep.subr.bf16.mxu0 0
        %518 = vmatpush1.bf16.msra.mxu0 0
        %519 = vmatprep.subr.bf16.mxu0 0
        %520 = vmatpush1.bf16.msra.mxu0 0
        %521 = vmatprep.subr.bf16.mxu0 0
        %522 = vmatpush1.bf16.msra.mxu0 0
        %523 = vmatprep.subr.bf16.mxu0 0
        %524 = vmatpush1.bf16.msra.mxu0 0
        %525 = vmatprep.subr.bf16.mxu0 0
        %526 = vmatpush1.bf16.msra.mxu0 0
        %527 = vmatprep.subr.bf16.mxu0 0
        %528 = vmatpush1.bf16.msra.mxu0 0
        %529 = vmatprep.subr.bf16.mxu0 0
        %530 = vmatpush1.bf16.msra.mxu0 0
        %531 = vmatprep.subr.bf16.mxu0 0
        %532 = vmatpush1.bf16.msra.mxu0 0
        %533 = vmatprep.mubr.bf16.mxu0 0
        %534 = vmatmul.mubr.bf16.gmra.mrb[0].mxu0 %v436
        %v535 = vpop.f32.mrb[0].mxu0
        %v536 = vadd.f32 %v487, %v535
        %v537 = vpop.f32.mrb[0].mxu0
        %v538 = vpop.f32.mrb[0].mxu0
        %v539 = vpop.f32.mrb[0].mxu0
        %540 = vdwg.mxu0
        %541 = vxpose.xlu0.b32.start [1/16] %v473, 128
        %542 = vxpose.xlu0.b32.cont [2/16] 0.0, 128
        %543 = vxpose.xlu0.b32.cont [3/16] 0.0, 128
        %544 = vxpose.xlu0.b32.cont [4/16] 0.0, 128
        %545 = vxpose.xlu0.b32.cont [5/16] 0.0, 128
        %546 = vxpose.xlu0.b32.cont [6/16] 0.0, 128
        %547 = vxpose.xlu0.b32.cont [7/16] 0.0, 128
        %548 = vxpose.xlu0.b32.cont [8/16] 0.0, 128
        %549 = vxpose.xlu0.b32.cont [9/16] 0.0, 128
        %550 = vxpose.xlu0.b32.cont [10/16] 0.0, 128
        %551 = vxpose.xlu0.b32.cont [11/16] 0.0, 128
        %552 = vxpose.xlu0.b32.cont [12/16] 0.0, 128
        %553 = vxpose.xlu0.b32.cont [13/16] 0.0, 128
        %554 = vxpose.xlu0.b32.cont [14/16] 0.0, 128
        %555 = vxpose.xlu0.b32.cont [15/16] 0.0, 128
        %556 = vxpose.xlu0.b32.end [16/16] 0.0, 128
        %v557 = vpop.trf.xlu0
        %v558 = vpop.trf.xlu0
        %v559 = vpop.trf.xlu0
        %v560 = vpop.trf.xlu0
        %v561 = vpop.trf.xlu0
        %v562 = vpop.trf.xlu0
        %v563 = vpop.trf.xlu0
        %v564 = vpop.trf.xlu0
        %v565 = vpop.trf.xlu0
        %v566 = vpop.trf.xlu0
        %v567 = vpop.trf.xlu0
        %v568 = vpop.trf.xlu0
        %v569 = vpop.trf.xlu0
        %v570 = vpop.trf.xlu0
        %v571 = vpop.trf.xlu0
        %v572 = vpop.trf.xlu0
        %v573 = vpack.c.bf16 %v557, %v557
        %v574 = vpack.c.bf16 %v558, %v558
        %v575 = vpack.c.bf16 %v559, %v559
        %v576 = vpack.c.bf16 %v560, %v560
        %vm577 = vcmask 60416
        %578 = vst.msk [vmem:[%s370] sm:$0xf] %vm577, %v573
        %579 = vst.msk [vmem:[%s370 + $0x4] sm:$0xf] %vm577, %v574
        %580 = vst.msk [vmem:[%s370 + $0x8] sm:$0xf] %vm577, %v575
        %581 = vst.msk [vmem:[%s370 + $0xc] sm:$0xf] %vm577, %v576
        %583 = vrot.lane.b32.xlu0 %v536, 120
        %v584 = vpop.permute.xlu0 %583
        %586 = vrot.lane.b32.xlu0 %v536, 112
        %v587 = vpop.permute.xlu0 %586
        %589 = vrot.lane.b32.xlu0 %v536, 104
        %v590 = vpop.permute.xlu0 %589
        %v592 = vcombine.low %v536, %v587
        %v593 = vcombine.high %v536, %v587
        %v595 = vunpack.c.l.s4 1983009808
        %v596 = vunpack.c.0.s8 %v595
        %v597 = vlaneseq
        %v598 = vshrl.u32 %v597, 7
        %v599 = vsub.s32 %v596, %v598
        %v600 = vrot.slane %v592, %v599
        %v602 = vunpack.c.l.s4 1983009808
        %v603 = vunpack.c.0.s8 %v602
        %v604 = vlaneseq
        %v605 = vshrl.u32 %v604, 7
        %v606 = vsub.s32 %v603, %v605
        %v607 = vrot.slane %v593, %v606
        %v608 = vcombine.low %v584, %v590
        %v609 = vcombine.high %v584, %v590
        %v611 = vunpack.c.l.s4 1983009808
        %v612 = vunpack.c.0.s8 %v611
        %v613 = vlaneseq
        %v614 = vshrl.u32 %v613, 7
        %v615 = vsub.s32 %v612, %v614
        %v616 = vrot.slane %v608, %v615
        %v618 = vunpack.c.l.s4 1983009808
        %v619 = vunpack.c.0.s8 %v618
        %v620 = vlaneseq
        %v621 = vshrl.u32 %v620, 7
        %v622 = vsub.s32 %v619, %v621
        %v623 = vrot.slane %v609, %v622
        %v624 = vcombine.low %v600, %v616
        %v625 = vcombine.high %v600, %v616
        %v627 = vunpack.c.l.s4 1934713408
        %v628 = vunpack.c.0.s8 %v627
        %v629 = vlaneseq
        %v630 = vshrl.u32 %v629, 7
        %v631 = vsub.s32 %v628, %v630
        %v632 = vrot.slane %v624, %v631
        %v634 = vunpack.c.l.s4 1934713408
        %v635 = vunpack.c.0.s8 %v634
        %v636 = vlaneseq
        %v637 = vshrl.u32 %v636, 7
        %v638 = vsub.s32 %v635, %v637
        %v639 = vrot.slane %v625, %v638
        %v640 = vcombine.low %v607, %v623
        %v641 = vcombine.high %v607, %v623
        %v643 = vunpack.c.l.s4 1934713408
        %v644 = vunpack.c.0.s8 %v643
        %v645 = vlaneseq
        %v646 = vshrl.u32 %v645, 7
        %v647 = vsub.s32 %v644, %v646
        %v648 = vrot.slane %v640, %v647
        %v650 = vunpack.c.l.s4 1934713408
        %v651 = vunpack.c.0.s8 %v650
        %v652 = vlaneseq
        %v653 = vshrl.u32 %v652, 7
        %v654 = vsub.s32 %v651, %v653
        %v655 = vrot.slane %v641, %v654
        %v656 = vcombine.high %v632, 0.0
        %v657 = vcombine.high %v639, 0.0
        %v658 = vcombine.high %v648, 0.0
        %v659 = vcombine.high %v655, 0.0
        %v660 = vcombine.low %v632, %v639
        %v662 = vunpack.c.l.s4 1983009808
        %v663 = vunpack.c.0.s8 %v662
        %v664 = vlaneseq
        %v665 = vshrl.u32 %v664, 7
        %v666 = vsub.s32 %v663, %v665
        %v667 = vrot.slane %v660, %v666
        %v668 = vcombine.low %v656, %v657
        %v670 = vunpack.c.l.s4 1983009808
        %v671 = vunpack.c.0.s8 %v670
        %v672 = vlaneseq
        %v673 = vshrl.u32 %v672, 7
        %v674 = vsub.s32 %v671, %v673
        %v675 = vrot.slane %v668, %v674
        %v676 = vcombine.low %v648, %v655
        %v678 = vunpack.c.l.s4 1983009808
        %v679 = vunpack.c.0.s8 %v678
        %v680 = vlaneseq
        %v681 = vshrl.u32 %v680, 7
        %v682 = vsub.s32 %v679, %v681
        %v683 = vrot.slane %v676, %v682
        %v684 = vcombine.low %v658, %v659
        %v686 = vunpack.c.l.s4 1983009808
        %v687 = vunpack.c.0.s8 %v686
        %v688 = vlaneseq
        %v689 = vshrl.u32 %v688, 7
        %v690 = vsub.s32 %v687, %v689
        %v691 = vrot.slane %v684, %v690
        %v692 = vcombine.low %v667, %v675
        %v693 = vcombine.high %v667, %v675
        %v695 = vunpack.c.l.s4 1934713408
        %v696 = vunpack.c.0.s8 %v695
        %v697 = vlaneseq
        %v698 = vshrl.u32 %v697, 7
        %v699 = vsub.s32 %v696, %v698
        %v700 = vrot.slane %v692, %v699
        %v702 = vunpack.c.l.s4 1934713408
        %v703 = vunpack.c.0.s8 %v702
        %v704 = vlaneseq
        %v705 = vshrl.u32 %v704, 7
        %v706 = vsub.s32 %v703, %v705
        %v707 = vrot.slane %v693, %v706
        %v708 = vcombine.low %v683, %v691
        %v709 = vcombine.high %v683, %v691
        %v711 = vunpack.c.l.s4 1934713408
        %v712 = vunpack.c.0.s8 %v711
        %v713 = vlaneseq
        %v714 = vshrl.u32 %v713, 7
        %v715 = vsub.s32 %v712, %v714
        %v716 = vrot.slane %v708, %v715
        %v718 = vunpack.c.l.s4 1934713408
        %v719 = vunpack.c.0.s8 %v718
        %v720 = vlaneseq
        %v721 = vshrl.u32 %v720, 7
        %v722 = vsub.s32 %v719, %v721
        %v723 = vrot.slane %v709, %v722
        %v724 = vcombine.low %v700, %v716
        %v725 = vcombine.high %v700, %v716
        %v726 = vcombine.low %v707, %v723
        %v727 = vcombine.high %v707, %v723
        %v728 = vpack.c.bf16 %v724, %v724
        %v729 = vpack.c.bf16 %v725, %v725
        %v730 = vpack.c.bf16 %v726, %v726
        %v731 = vpack.c.bf16 %v727, %v727
        %732 = vst.msk [vmem:[%s377] sm:$0xf] %vm577, %v728
        %733 = vst.msk [vmem:[%s377 + $0x4] sm:$0xf] %vm577, %v729
        %734 = vst.msk [vmem:[%s377 + $0x8] sm:$0xf] %vm577, %v730
        %735 = vst.msk [vmem:[%s377 + $0xc] sm:$0xf] %vm577, %v731
        %s736 = sand.u32 %s206, 1
        %s737 = scalar_lea.sflag [#allocation4], %s736
        %s738 = sand.u32 %s206, 1
        %s739 = smul.addr %s738, 16
        %s740 = scalar_lea.vmem [#allocation8], %s739
        %s741 = sand.u32 %s234, 1
        %s742 = scalar_lea.sflag [#allocation10], %s741
        %s743 = sand.u32 %s234, 1
        %s744 = smul.addr %s743, 16
        %s745 = scalar_lea.vmem [#allocation9], %s744
        // Predicated region
        $region61: #{tpu_custom_call.1} parent=47 // pred_check
          %p746 = pneg %p216
        $region62: #{tpu_custom_call.1} parent=47 // pred_check_branch
          %748 = sbr.rel (%p746) target = $region64
        $region63: #{tpu_custom_call.1} parent=47 // pred_region
          %s750 = ssub.s32 256, 256
          %751 = vsyncadd %s737, %s750
          %s752 = smul.addr %s34, 4
          %s753 = sadd.s32 %s35, %s752
          %s754 = smul.addr %s753, 64
          %s755 = scalar_lea.hbm %s7, %s754
          %s756 = sshll.u32 %s740, 4
          %s757 = int_to_ptr.vmem [resolvable:$true] %s756
          %762 = dma.vmem_to_hbm [thread:$0]  %s757, 256, %s755, %s737, 64, 64, 4
        $region64: #{tpu_custom_call.1} parent=47 // pred_fallthru
          _
        // Predicated region
        $region65: #{tpu_custom_call.1} parent=47 // pred_check
          %p763 = pneg %p244
        $region66: #{tpu_custom_call.1} parent=47 // pred_check_branch
          %765 = sbr.rel (%p763) target = $region68
        $region67: #{tpu_custom_call.1} parent=47 // pred_region
          %s767 = ssub.s32 256, 256
          %768 = vsyncadd %s742, %s767
          %s769 = smul.addr %s34, 4
          %s770 = sadd.s32 %s35, %s769
          %s771 = smul.addr %s770, 64
          %s772 = scalar_lea.hbm %s8, %s771
          %s773 = sshll.u32 %s745, 4
          %s774 = int_to_ptr.vmem [resolvable:$true] %s773
          %779 = dma.vmem_to_hbm [thread:$0]  %s774, 256, %s772, %s742, 64, 64, 4
        $region68: #{tpu_custom_call.1} parent=47 // pred_fallthru
          _
      $region48: #{tpu_custom_call.1} parent=5 // pred_fallthru
        _
      %p780 = scmp.le.s32.totalorder 2, %s25
      // Predicated region
      $region69: #{tpu_custom_call.1} parent=5 // pred_check
        %p781 = pneg %p780
      $region70: #{tpu_custom_call.1} parent=5 // pred_check_branch
        %783 = sbr.rel (%p781) target = $region72
      $region71: #{tpu_custom_call.1} parent=5 // pred_region
        %s784 = ssub.s32 %s25, 2
        // Predicated region
        $region73: #{tpu_custom_call.1} parent=71 // pred_check
          %p785 = pneg %p222
        $region74: #{tpu_custom_call.1} parent=71 // pred_check_branch
          %787 = sbr.rel (%p785) target = $region76
        $region75: #{tpu_custom_call.1} parent=71 // pred_region
          %s788 = sand.u32 %s207, 1
          %s789 = scalar_lea.sflag [#allocation4], %s788
          %s790 = sand.u32 %s207, 1
          %s791 = smul.addr %s790, 16
          %s792 = scalar_lea.vmem [#allocation8], %s791
          %793 = dma.done %s789, 256
        $region76: #{tpu_custom_call.1} parent=71 // pred_fallthru
          _
        // Predicated region
        $region77: #{tpu_custom_call.1} parent=71 // pred_check
          %p794 = pneg %p250
        $region78: #{tpu_custom_call.1} parent=71 // pred_check_branch
          %796 = sbr.rel (%p794) target = $region80
        $region79: #{tpu_custom_call.1} parent=71 // pred_region
          %s797 = sand.u32 %s235, 1
          %s798 = scalar_lea.sflag [#allocation10], %s797
          %s799 = sand.u32 %s235, 1
          %s800 = smul.addr %s799, 16
          %s801 = scalar_lea.vmem [#allocation9], %s800
          %802 = dma.done %s798, 256
        $region80: #{tpu_custom_call.1} parent=71 // pred_fallthru
          _
      $region72: #{tpu_custom_call.1} parent=5 // pred_fallthru
        _
    $region6: #{tpu_custom_call.1} parent=1 // loop_footer
      %s29 = sadd.s32 1, %s25
    $region7: #{tpu_custom_call.1} parent=1 // loop_footer_branch
      %24 = sbr.rel target = $region3
    $region8: #{tpu_custom_call.1} parent=1 // loop_exit
      _
    %803 = vsyncpa [#allocation3], 1
    %s804 = scalar_lea.sflag [#allocation3], 1
    %805 = vsyncpa %s804, 1
    %806 = vsyncpa [#allocation6], 1
    %807 = vsyncpa [#allocation4], 1
    %s808 = scalar_lea.sflag [#allocation4], 1
    %809 = vsyncpa %s808, 1
    %810 = vsyncpa [#allocation10], 1
    %s811 = scalar_lea.sflag [#allocation10], 1
    %812 = vsyncpa %s811, 1

// kernel: tpu_custom_call.1
$region0: #{tpu_custom_call.1}
  #allocation0 [shape = 'u32[]', space=smem, size = 0x4, offset = 0x4, fixed_abs, tag = 'smem constant byte address 0x4 - core index']
  #allocation1 [shape = 'u32[144,128]{1,0:T(1,128)}', space=vmem, size = 0x12000, scoped, tag = 'internal scratch']
  %s0 = inlined_call_operand.hbm [shape: f32[2,8,32], index: 0, kind: input, shape index: {}]
  %s1 = inlined_call_operand.vmem [shape: f32[1,32], index: 1, kind: input, shape index: {}]
  %s2 = inlined_call_operand.vmem [shape: f32[1,32], index: 2, kind: input, shape index: {}]
  %s3 = inlined_call_operand.hbm [shape: bf16[32,32], index: 3, kind: input, shape index: {}]
  %s4 = inlined_call_operand.hbm [shape: f32[1,32], index: 4, kind: input, shape index: {}]
  %s5 = inlined_call_operand.vmem [shape: bf16[32,32], index: 5, kind: input, shape index: {}]
  %s6 = inlined_call_operand.vmem [shape: f32[1,32], index: 6, kind: input, shape index: {}]
  %s7 = inlined_call_operand.hbm [shape: bf16[2,4,8,8], index: 7, kind: output, shape index: {0}]
  %s8 = inlined_call_operand.hbm [shape: bf16[2,4,8,8], index: 8, kind: output, shape index: {1}]
  %9 = xla_tuple %s7, %s8
  %s10 = sld [smem:[#allocation0]]
  $region81: #{tpu_custom_call.1} parent=0
    _
  %s12 = ssub.s32 1, %s10
  %s13 = scalar_select 0, %s12, %s10
  $region1: #{tpu_custom_call.1} parent=0
    #allocation2 [shape = 'u8[8192]{0}', space=vmem, size = 0x2000, scoped, tag = 'input window, operand 0']
    #allocation3 [shape = 's32[2]{0}', space=sflag, size = 0x8, scoped, tag = 'scoped memory for tpu_custom_call.1']
    #allocation4 [shape = 's32[2]{0}', space=sflag, size = 0x8, scoped, tag = 'scoped memory for tpu_custom_call.1']
    #allocation5 [shape = 'u8[8192]{0}', space=vmem, size = 0x2000, scoped, tag = 'input window, operand 3, single buffered']
    #allocation6 [shape = 's32[1]{0}', space=sflag, size = 0x4, scoped, tag = 'scoped memory for tpu_custom_call.1']
    #allocation7 [shape = 'u8[512]{0}', space=vmem, size = 0x400, scoped, tag = 'input window, operand 4, single buffered']
    #allocation8 [shape = 'u8[16384]{0}', space=vmem, size = 0x4000, scoped, tag = 'output window, operand 0']
    #allocation9 [shape = 'u8[16384]{0}', space=vmem, size = 0x4000, scoped, tag = 'output window, operand 1']
    #allocation10 [shape = 's32[2]{0}', space=sflag, size = 0x8, scoped, tag = 'scoped memory for tpu_custom_call.1']
    %14 = vsyncpa [#allocation3], 0
    %s15 = scalar_lea.sflag [#allocation3], 1
    %16 = vsyncpa %s15, 0
    %17 = vsyncpa [#allocation6], 0
    %18 = vsyncpa [#allocation4], 0
    %s19 = scalar_lea.sflag [#allocation4], 1
    %20 = vsyncpa %s19, 0
    %21 = vsyncpa [#allocation10], 0
    %s22 = scalar_lea.sflag [#allocation10], 1
    %23 = vsyncpa %s22, 0
    loop: start=0, step=1, limit=4
    $region2: #{tpu_custom_call.1} parent=1 // loop_pre_header
      _
    $region3: #{tpu_custom_call.1} parent=1 // loop_header
      %s25 = sphi 0, %s29
      %p26 = scmp.ge.s32.totalorder %s25, 4
      %s32 = sphi 0, %s44
      %s33 = sphi 0, %s40
      %s34 = sphi 0, %s32
      %s35 = sphi 0, %s33
      %s36 = sphi 0, %s34
      %s37 = sphi 0, %s35
      %s49 = sphi 0, %s51
      %s52 = sphi 0, %s49
      %s53 = sphi 0, %s52
      %s69 = sphi 0, %s53
      %s73 = sphi 0, %s73
      %s75 = sphi 0, %s73
      %s76 = sphi 0, %s75
      %s90 = sphi 0, %s76
      %s94 = sphi 0, %s94
      %s96 = sphi 0, %s94
      %s97 = sphi 0, %s96
      %s111 = sphi 0, %s97
      %s115 = sphi 0, %s115
      %s117 = sphi 0, %s115
      %s118 = sphi 0, %s117
      %s132 = sphi 0, %s118
      %s136 = sphi 0, %s136
      %s138 = sphi 0, %s136
      %s139 = sphi 0, %s138
      %s153 = sphi 0, %s139
      %s157 = sphi 0, %s157
      %s159 = sphi 0, %s157
      %s160 = sphi 0, %s159
      %s174 = sphi 0, %s160
      %s178 = sphi 0, %s178
      %s180 = sphi 0, %s178
      %s181 = sphi 0, %s180
      %s195 = sphi 0, %s181
      %s203 = sphi 0, %s205
      %s206 = sphi 0, %s203
      %s207 = sphi 0, %s206
      %s223 = sphi 0, %s207
      %s231 = sphi 0, %s233
      %s234 = sphi 0, %s231
      %s235 = sphi 0, %s234
      %s251 = sphi 0, %s235
    $region4: #{tpu_custom_call.1} parent=1 // loop_header_branch
      %28 = sbr.rel (%p26) target = $region8
    $region5: #{tpu_custom_call.1} parent=1 // loop_body
      %s30 = ssub.s32 %s25, 1
      %s31 = ssub.s32 %s25, 2
      %s38 = sadd.s32 1, %s33
      %p39 = scmp.ge.s32.totalorder %s38, 1
      %s40 = scalar_select %p39, 0, %s38
      %s41 = sadd.s32 1, %s32
      %s42 = scalar_select %p39, %s41, %s32
      %p43 = scmp.ge.s32.totalorder %s42, 2
      %s44 = scalar_select %p43, 0, %s42
      %s45 = ssub.s32 %s32, %s44
      %s46 = ssub.s32 %s33, %s40
      %s47 = sor.u32 %s45, %s46
      %p48 = scmp.eq.s32.totalorder %s47, 0
      %s50 = sadd.s32 %s49, 1
      %s51 = scalar_select %p48, %s49, %s50
      %p54 = pneg %p48
      %p55 = scmp.eq.s32.totalorder %s25, 1
      %p56 = por %p54, %p55
      %p57 = scmp.ne.s32.totalorder %s49, %s52
      %p58 = scmp.eq.s32.totalorder %s25, 0
      %p59 = por %p57, %p58
      %p60 = scmp.ne.s32.totalorder %s49, %s52
      %p61 = scmp.eq.s32.totalorder %s30, 1
      %p62 = por %p60, %p61
      %p63 = scmp.ne.s32.totalorder %s52, %s53
      %p64 = scmp.eq.s32.totalorder %s30, 0
      %p65 = por %p63, %p64
      %p66 = scmp.ne.s32.totalorder %s52, %s53
      %p67 = scmp.eq.s32.totalorder %s31, 1
      %p68 = por %p66, %p67
      %p70 = scmp.ne.s32.totalorder %s53, %s69
      %p71 = scmp.eq.s32.totalorder %s31, 0
      %p72 = por %p70, %p71
      %s74 = sadd.s32 %s73, 1
      %p77 = scmp.eq.s32.totalorder %s25, 1
      %p78 = scmp.ne.s32.totalorder %s73, %s75
      %p79 = scmp.eq.s32.totalorder %s25, 0
      %p80 = por %p78, %p79
      %p81 = scmp.ne.s32.totalorder %s73, %s75
      %p82 = scmp.eq.s32.totalorder %s30, 1
      %p83 = por %p81, %p82
      %p84 = scmp.ne.s32.totalorder %s75, %s76
      %p85 = scmp.eq.s32.totalorder %s30, 0
      %p86 = por %p84, %p85
      %p87 = scmp.ne.s32.totalorder %s75, %s76
      %p88 = scmp.eq.s32.totalorder %s31, 1
      %p89 = por %p87, %p88
      %p91 = scmp.ne.s32.totalorder %s76, %s90
      %p92 = scmp.eq.s32.totalorder %s31, 0
      %p93 = por %p91, %p92
      %s95 = sadd.s32 %s94, 1
      %p98 = scmp.eq.s32.totalorder %s25, 1
      %p99 = scmp.ne.s32.totalorder %s94, %s96
      %p100 = scmp.eq.s32.totalorder %s25, 0
      %p101 = por %p99, %p100
      %p102 = scmp.ne.s32.totalorder %s94, %s96
      %p103 = scmp.eq.s32.totalorder %s30, 1
      %p104 = por %p102, %p103
      %p105 = scmp.ne.s32.totalorder %s96, %s97
      %p106 = scmp.eq.s32.totalorder %s30, 0
      %p107 = por %p105, %p106
      %p108 = scmp.ne.s32.totalorder %s96, %s97
      %p109 = scmp.eq.s32.totalorder %s31, 1
      %p110 = por %p108, %p109
      %p112 = scmp.ne.s32.totalorder %s97, %s111
      %p113 = scmp.eq.s32.totalorder %s31, 0
      %p114 = por %p112, %p113
      %s116 = sadd.s32 %s115, 1
      %p119 = scmp.eq.s32.totalorder %s25, 1
      %p120 = scmp.ne.s32.totalorder %s115, %s117
      %p121 = scmp.eq.s32.totalorder %s25, 0
      %p122 = por %p120, %p121
      %p123 = scmp.ne.s32.totalorder %s115, %s117
      %p124 = scmp.eq.s32.totalorder %s30, 1
      %p125 = por %p123, %p124
      %p126 = scmp.ne.s32.totalorder %s117, %s118
      %p127 = scmp.eq.s32.totalorder %s30, 0
      %p128 = por %p126, %p127
      %p129 = scmp.ne.s32.totalorder %s117, %s118
      %p130 = scmp.eq.s32.totalorder %s31, 1
      %p131 = por %p129, %p130
      %p133 = scmp.ne.s32.totalorder %s118, %s132
      %p134 = scmp.eq.s32.totalorder %s31, 0
      %p135 = por %p133, %p134
      %s137 = sadd.s32 %s136, 1
      %p140 = scmp.eq.s32.totalorder %s25, 1
      %p141 = scmp.ne.s32.totalorder %s136, %s138
      %p142 = scmp.eq.s32.totalorder %s25, 0
      %p143 = por %p141, %p142
      %p144 = scmp.ne.s32.totalorder %s136, %s138
      %p145 = scmp.eq.s32.totalorder %s30, 1
      %p146 = por %p144, %p145
      %p147 = scmp.ne.s32.totalorder %s138, %s139
      %p148 = scmp.eq.s32.totalorder %s30, 0
      %p149 = por %p147, %p148
      %p150 = scmp.ne.s32.totalorder %s138, %s139
      %p151 = scmp.eq.s32.totalorder %s31, 1
      %p152 = por %p150, %p151
      %p154 = scmp.ne.s32.totalorder %s139, %s153
      %p155 = scmp.eq.s32.totalorder %s31, 0
      %p156 = por %p154, %p155
      %s158 = sadd.s32 %s157, 1
      %p161 = scmp.eq.s32.totalorder %s25, 1
      %p162 = scmp.ne.s32.totalorder %s157, %s159
      %p163 = scmp.eq.s32.totalorder %s25, 0
      %p164 = por %p162, %p163
      %p165 = scmp.ne.s32.totalorder %s157, %s159
      %p166 = scmp.eq.s32.totalorder %s30, 1
      %p167 = por %p165, %p166
      %p168 = scmp.ne.s32.totalorder %s159, %s160
      %p169 = scmp.eq.s32.totalorder %s30, 0
      %p170 = por %p168, %p169
      %p171 = scmp.ne.s32.totalorder %s159, %s160
      %p172 = scmp.eq.s32.totalorder %s31, 1
      %p173 = por %p171, %p172
      %p175 = scmp.ne.s32.totalorder %s160, %s174
      %p176 = scmp.eq.s32.totalorder %s31, 0
      %p177 = por %p175, %p176
      %s179 = sadd.s32 %s178, 1
      %p182 = scmp.eq.s32.totalorder %s25, 1
      %p183 = scmp.ne.s32.totalorder %s178, %s180
      %p184 = scmp.eq.s32.totalorder %s25, 0
      %p185 = por %p183, %p184
      %p186 = scmp.ne.s32.totalorder %s178, %s180
      %p187 = scmp.eq.s32.totalorder %s30, 1
      %p188 = por %p186, %p187
      %p189 = scmp.ne.s32.totalorder %s180, %s181
      %p190 = scmp.eq.s32.totalorder %s30, 0
      %p191 = por %p189, %p190
      %p192 = scmp.ne.s32.totalorder %s180, %s181
      %p193 = scmp.eq.s32.totalorder %s31, 1
      %p194 = por %p192, %p193
      %p196 = scmp.ne.s32.totalorder %s181, %s195
      %p197 = scmp.eq.s32.totalorder %s31, 0
      %p198 = por %p196, %p197
      %s199 = ssub.s32 %s32, %s44
      %s200 = ssub.s32 %s33, %s40
      %s201 = sor.u32 %s199, %s200
      %p202 = scmp.eq.s32.totalorder %s201, 0
      %s204 = sadd.s32 %s203, 1
      %s205 = scalar_select %p202, %s203, %s204
      %p208 = pneg %p202
      %p209 = scmp.eq.s32.totalorder %s25, 1
      %p210 = por %p208, %p209
      %p211 = scmp.ne.s32.totalorder %s203, %s206
      %p212 = scmp.eq.s32.totalorder %s25, 0
      %p213 = por %p211, %p212
      %p214 = scmp.ne.s32.totalorder %s203, %s206
      %p215 = scmp.eq.s32.totalorder %s30, 1
      %p216 = por %p214, %p215
      %p217 = scmp.ne.s32.totalorder %s206, %s207
      %p218 = scmp.eq.s32.totalorder %s30, 0
      %p219 = por %p217, %p218
      %p220 = scmp.ne.s32.totalorder %s206, %s207
      %p221 = scmp.eq.s32.totalorder %s31, 1
      %p222 = por %p220, %p221
      %p224 = scmp.ne.s32.totalorder %s207, %s223
      %p225 = scmp.eq.s32.totalorder %s31, 0
      %p226 = por %p224, %p225
      %s227 = ssub.s32 %s32, %s44
      %s228 = ssub.s32 %s33, %s40
      %s229 = sor.u32 %s227, %s228
      %p230 = scmp.eq.s32.totalorder %s229, 0
      %s232 = sadd.s32 %s231, 1
      %s233 = scalar_select %p230, %s231, %s232
      %p236 = pneg %p230
      %p237 = scmp.eq.s32.totalorder %s25, 1
      %p238 = por %p236, %p237
      %p239 = scmp.ne.s32.totalorder %s231, %s234
      %p240 = scmp.eq.s32.totalorder %s25, 0
      %p241 = por %p239, %p240
      %p242 = scmp.ne.s32.totalorder %s231, %s234
      %p243 = scmp.eq.s32.totalorder %s30, 1
      %p244 = por %p242, %p243
      %p245 = scmp.ne.s32.totalorder %s234, %s235
      %p246 = scmp.eq.s32.totalorder %s30, 0
      %p247 = por %p245, %p246
      %p248 = scmp.ne.s32.totalorder %s234, %s235
      %p249 = scmp.eq.s32.totalorder %s31, 1
      %p250 = por %p248, %p249
      %p252 = scmp.ne.s32.totalorder %s235, %s251
      %p253 = scmp.eq.s32.totalorder %s31, 0
      %p254 = por %p252, %p253
      %p255 = scmp.le.s32.totalorder 1, %s25
      %p256 = scmp.lt.s32.totalorder %s25, 3
      %p257 = pnand %p255, %p256
      %p258 = pneg %p257
      // Predicated region
      $region9: #{tpu_custom_call.1} parent=5 // pred_check
        _
      $region10: #{tpu_custom_call.1} parent=5 // pred_check_branch
        %260 = sbr.rel (%p257) target = $region12
      $region11: #{tpu_custom_call.1} parent=5 // pred_region
        %s261 = ssub.s32 %s25, 1
        // Predicated region
        $region13: #{tpu_custom_call.1} parent=11 // pred_check
          %p262 = pneg %p86
        $region14: #{tpu_custom_call.1} parent=11 // pred_check_branch
          %264 = sbr.rel (%p262) target = $region16
        $region15: #{tpu_custom_call.1} parent=11 // pred_region
          _
        $region16: #{tpu_custom_call.1} parent=11 // pred_fallthru
          _
        // Predicated region
        $region17: #{tpu_custom_call.1} parent=11 // pred_check
          %p265 = pneg %p107
        $region18: #{tpu_custom_call.1} parent=11 // pred_check_branch
          %267 = sbr.rel (%p265) target = $region20
        $region19: #{tpu_custom_call.1} parent=11 // pred_region
          _
        $region20: #{tpu_custom_call.1} parent=11 // pred_fallthru
          _
        // Predicated region
        $region21: #{tpu_custom_call.1} parent=11 // pred_check
          %p268 = pneg %p128
        $region22: #{tpu_custom_call.1} parent=11 // pred_check_branch
          %270 = sbr.rel (%p268) target = $region24
        $region23: #{tpu_custom_call.1} parent=11 // pred_region
          %s272 = ssub.s32 256, 256
          %273 = vsyncadd [#allocation6], %s272
          %s274 = sshll.u32 [#allocation5], 4
          %s275 = int_to_ptr.vmem [resolvable:$true] %s274
          %280 = dma.hbm_to_vmem [thread:$0]  %s3, 256, %s275, [#allocation6], 64, 64, 4
        $region24: #{tpu_custom_call.1} parent=11 // pred_fallthru
          _
        // Predicated region
        $region25: #{tpu_custom_call.1} parent=11 // pred_check
          %p281 = pneg %p149
        $region26: #{tpu_custom_call.1} parent=11 // pred_check_branch
          %283 = sbr.rel (%p281) target = $region28
        $region27: #{tpu_custom_call.1} parent=11 // pred_region
          %s285 = ssub.s32 16, 16
          %286 = vsyncadd [#allocation6], %s285
          %s288 = sshll.u32 [#allocation7], 4
          %s289 = int_to_ptr.vmem [resolvable:$true] %s288
          %291 = dma.hbm_to_vmem [thread:$0]  %s4, 16, %s289, [#allocation6]
        $region28: #{tpu_custom_call.1} parent=11 // pred_fallthru
          _
        // Predicated region
        $region29: #{tpu_custom_call.1} parent=11 // pred_check
          %p292 = pneg %p170
        $region30: #{tpu_custom_call.1} parent=11 // pred_check_branch
          %294 = sbr.rel (%p292) target = $region32
        $region31: #{tpu_custom_call.1} parent=11 // pred_region
          _
        $region32: #{tpu_custom_call.1} parent=11 // pred_fallthru
          _
        // Predicated region
        $region33: #{tpu_custom_call.1} parent=11 // pred_check
          %p295 = pneg %p191
        $region34: #{tpu_custom_call.1} parent=11 // pred_check_branch
          %297 = sbr.rel (%p295) target = $region36
        $region35: #{tpu_custom_call.1} parent=11 // pred_region
          _
        $region36: #{tpu_custom_call.1} parent=11 // pred_fallthru
          _
      $region12: #{tpu_custom_call.1} parent=5 // pred_fallthru
        _
      %p298 = scmp.lt.s32.totalorder %s25, 2
      // Predicated region
      $region37: #{tpu_custom_call.1} parent=5 // pred_check
        %p299 = pneg %p298
      $region38: #{tpu_custom_call.1} parent=5 // pred_check_branch
        %301 = sbr.rel (%p299) target = $region40
      $region39: #{tpu_custom_call.1} parent=5 // pred_region
        // Predicated region
        $region41: #{tpu_custom_call.1} parent=39 // pred_check
          %p302 = pneg %p59
        $region42: #{tpu_custom_call.1} parent=39 // pred_check_branch
          %304 = sbr.rel (%p302) target = $region44
        $region43: #{tpu_custom_call.1} parent=39 // pred_region
          %s305 = sand.u32 %s49, 1
          %s306 = scalar_lea.sflag [#allocation3], %s305
          %s307 = sand.u32 %s49, 1
          %s308 = smul.addr %s307, 8
          %s309 = scalar_lea.vmem [#allocation2], %s308
          %s311 = ssub.s32 128, 128
          %312 = vsyncadd %s306, %s311
          %s313 = sadd.s32 %s33, %s32
          %s314 = smul.addr %s313, 128
          %s315 = scalar_lea.hbm %s0, %s314
          %s317 = sshll.u32 %s309, 4
          %s318 = int_to_ptr.vmem [resolvable:$true] %s317
          %320 = dma.hbm_to_vmem [thread:$0]  %s315, 128, %s318, %s306
        $region44: #{tpu_custom_call.1} parent=39 // pred_fallthru
          _
      $region40: #{tpu_custom_call.1} parent=5 // pred_fallthru
        _
      %p321 = scmp.le.s32.totalorder 1, %s25
      %p322 = scmp.lt.s32.totalorder %s25, 3
      %p323 = pnand %p321, %p322
      %p324 = pneg %p323
      // Predicated region
      $region45: #{tpu_custom_call.1} parent=5 // pred_check
        _
      $region46: #{tpu_custom_call.1} parent=5 // pred_check_branch
        %326 = sbr.rel (%p323) target = $region48
      $region47: #{tpu_custom_call.1} parent=5 // pred_region
        %s327 = ssub.s32 %s25, 1
        %s328 = sand.u32 %s52, 1
        %s329 = scalar_lea.sflag [#allocation3], %s328
        %s330 = sand.u32 %s52, 1
        %s331 = smul.addr %s330, 8
        %s332 = scalar_lea.vmem [#allocation2], %s331
        // Predicated region
        $region49: #{tpu_custom_call.1} parent=47 // pred_check
          %p333 = pneg %p65
        $region50: #{tpu_custom_call.1} parent=47 // pred_check_branch
          %335 = sbr.rel (%p333) target = $region52
        $region51: #{tpu_custom_call.1} parent=47 // pred_region
          %336 = dma.done %s329, 128
        $region52: #{tpu_custom_call.1} parent=47 // pred_fallthru
          _
        // Predicated region
        $region53: #{tpu_custom_call.1} parent=47 // pred_check
          %p337 = pneg %p128
        $region54: #{tpu_custom_call.1} parent=47 // pred_check_branch
          %339 = sbr.rel (%p337) target = $region56
        $region55: #{tpu_custom_call.1} parent=47 // pred_region
          %340 = dma.done [#allocation6], 256
        $region56: #{tpu_custom_call.1} parent=47 // pred_fallthru
          _
        // Predicated region
        $region57: #{tpu_custom_call.1} parent=47 // pred_check
          %p341 = pneg %p149
        $region58: #{tpu_custom_call.1} parent=47 // pred_check_branch
          %343 = sbr.rel (%p341) target = $region60
        $region59: #{tpu_custom_call.1} parent=47 // pred_region
          %344 = dma.done [#allocation6], 16
        $region60: #{tpu_custom_call.1} parent=47 // pred_fallthru
          _
        %s345 = sand.u32 %s52, 1
        %s346 = scalar_lea.sflag [#allocation3], %s345
        %s347 = sand.u32 %s52, 1
        %s348 = smul.addr %s347, 8
        %s349 = scalar_lea.vmem [#allocation2], %s348
        %p350 = pneg %p65
        %p351 = pneg %p62
        %p352 = pneg %p86
        %p353 = pneg %p83
        %p354 = pneg %p107
        %p355 = pneg %p104
        %p356 = pneg %p128
        %p357 = pneg %p125
        %p358 = pneg %p149
        %p359 = pneg %p146
        %p360 = pneg %p170
        %p361 = pneg %p167
        %p362 = pneg %p191
        %p363 = pneg %p188
        %p364 = pneg %p219
        %p365 = pneg %p216
        %s366 = sand.u32 %s206, 1
        %s367 = scalar_lea.sflag [#allocation4], %s366
        %s368 = sand.u32 %s206, 1
        %s369 = smul.addr %s368, 16
        %s370 = scalar_lea.vmem [#allocation8], %s369
        %p371 = pneg %p247
        %p372 = pneg %p244
        %s373 = sand.u32 %s234, 1
        %s374 = scalar_lea.sflag [#allocation10], %s373
        %s375 = sand.u32 %s234, 1
        %s376 = smul.addr %s375, 16
        %s377 = scalar_lea.vmem [#allocation9], %s376
        %v379 = vld [vmem:[%s332] sm:$0xff]
        %v380 = vld [vmem:[%s1] sm:$0x1]
        %v381 = vld [vmem:[%s2] sm:$0x1]
        %vm382 = vcmask 261120
        %v383 = vsel %vm382, %v379, 0.0
        %384 = vadd.xlane.f32.xlu0 %v383
        %v385 = vpop.xlane.xlu0 %384
        %v386 = vrcp.pop 32.0
        %v387 = vmul.f32 %v385, %v386
        %v388 = vsub.f32 %v379, %v387
        %v389 = vmul.f32 %v388, %v388
        %v390 = vsel %vm382, %v389, 0.0
        %391 = vadd.xlane.f32.xlu0 %v390
        %v392 = vpop.xlane.xlu0 %391
        %v393 = vmul.f32 %v392, %v386
        %v394 = vadd.f32 %v393, 1e-05
        %v395 = vrsqrt.pop %v394
        %v396 = vmul.f32 %v388, %v395
        %v398 = vlaneseq
        %v399 = vshrl.u32 %v398, 7
        %v400 = vsub.s32 0, %v399
        %v401 = vrot.slane %v380, %v400
        %v403 = vmul.f32 %v396, %v401
        %v405 = vlaneseq
        %v406 = vshrl.u32 %v405, 7
        %v407 = vsub.s32 0, %v406
        %v408 = vrot.slane %v381, %v407
        %v410 = vadd.f32 %v403, %v408
        %v411 = vpack.c.bf16 %v410, %v410
        %v412 = vld [vmem:[#allocation5] sm:$0xf]
        %v413 = vld [vmem:[#allocation5 + $0x4] sm:$0xf]
        %v414 = vld [vmem:[#allocation5 + $0x8] sm:$0xf]
        %v415 = vld [vmem:[#allocation5 + $0xc] sm:$0xf]
        %v416 = vld [vmem:[#allocation7] sm:$0x1]
        %v418 = vlaneseq
        %v419 = vshrl.u32 %v418, 7
        %v420 = vsub.s32 0, %v419
        %v421 = vrot.slane %v416, %v420
        %v427 = vunpack.c.l.b16 %v412
        %v428 = vunpack.c.l.b16 %v413
        %v429 = vunpack.c.l.b16 %v414
        %v430 = vunpack.c.l.b16 %v415
        %v431 = vpack.c.b16 %v428, %v427
        %v432 = vpack.c.b16 %v430, %v429
        %v436 = vsel %vm382, %v411, 0
        %438 = vmatprep.subr.bf16.mxu0 0
        %439 = vmatpush1.bf16.msra.mxu0 %v431
        %440 = vmatprep.subr.bf16.mxu0 0
        %441 = vmatpush1.bf16.msra.mxu0 %v432
        %442 = vmatprep.subr.bf16.mxu0 0
        %443 = vmatpush1.bf16.msra.mxu0 0
        %444 = vmatprep.subr.bf16.mxu0 0
        %445 = vmatpush1.bf16.msra.mxu0 0
        %446 = vmatprep.subr.bf16.mxu0 0
        %447 = vmatpush1.bf16.msra.mxu0 0
        %448 = vmatprep.subr.bf16.mxu0 0
        %449 = vmatpush1.bf16.msra.mxu0 0
        %450 = vmatprep.subr.bf16.mxu0 0
        %451 = vmatpush1.bf16.msra.mxu0 0
        %452 = vmatprep.subr.bf16.mxu0 0
        %453 = vmatpush1.bf16.msra.mxu0 0
        %454 = vmatprep.subr.bf16.mxu0 0
        %455 = vmatpush1.bf16.msra.mxu0 0
        %456 = vmatprep.subr.bf16.mxu0 0
        %457 = vmatpush1.bf16.msra.mxu0 0
        %458 = vmatprep.subr.bf16.mxu0 0
        %459 = vmatpush1.bf16.msra.mxu0 0
        %460 = vmatprep.subr.bf16.mxu0 0
        %461 = vmatpush1.bf16.msra.mxu0 0
        %462 = vmatprep.subr.bf16.mxu0 0
        %463 = vmatpush1.bf16.msra.mxu0 0
        %464 = vmatprep.subr.bf16.mxu0 0
        %465 = vmatpush1.bf16.msra.mxu0 0
        %466 = vmatprep.subr.bf16.mxu0 0
        %467 = vmatpush1.bf16.msra.mxu0 0
        %468 = vmatprep.subr.bf16.mxu0 0
        %469 = vmatpush1.bf16.msra.mxu0 0
        %470 = vmatprep.mubr.bf16.mxu0 0
        %471 = vmatmul.mubr.bf16.gmra.mrb[0].mxu0 %v436
        %v472 = vpop.f32.mrb[0].mxu0
        %v473 = vadd.f32 %v421, %v472
        %v474 = vpop.f32.mrb[0].mxu0
        %v475 = vpop.f32.mrb[0].mxu0
        %v476 = vpop.f32.mrb[0].mxu0
        %477 = vdwg.mxu0
        %v478 = vld [vmem:[%s5] sm:$0xf]
        %v479 = vld [vmem:[%s5 + $0x4] sm:$0xf]
        %v480 = vld [vmem:[%s5 + $0x8] sm:$0xf]
        %v481 = vld [vmem:[%s5 + $0xc] sm:$0xf]
        %v482 = vld [vmem:[%s6] sm:$0x1]
        %v484 = vlaneseq
        %v485 = vshrl.u32 %v484, 7
        %v486 = vsub.s32 0, %v485
        %v487 = vrot.slane %v482, %v486
        %v493 = vunpack.c.l.b16 %v478
        %v494 = vunpack.c.l.b16 %v479
        %v495 = vunpack.c.l.b16 %v480
        %v496 = vunpack.c.l.b16 %v481
        %v497 = vpack.c.b16 %v494, %v493
        %v498 = vpack.c.b16 %v496, %v495
        %501 = vmatprep.subr.bf16.mxu0 0
        %502 = vmatpush1.bf16.msra.mxu0 %v497
        %503 = vmatprep.subr.bf16.mxu0 0
        %504 = vmatpush1.bf16.msra.mxu0 %v498
        %505 = vmatprep.subr.bf16.mxu0 0
        %506 = vmatpush1.bf16.msra.mxu0 0
        %507 = vmatprep.subr.bf16.mxu0 0
        %508 = vmatpush1.bf16.msra.mxu0 0
        %509 = vmatprep.subr.bf16.mxu0 0
        %510 = vmatpush1.bf16.msra.mxu0 0
        %511 = vmatprep.subr.bf16.mxu0 0
        %512 = vmatpush1.bf16.msra.mxu0 0
        %513 = vmatprep.subr.bf16.mxu0 0
        %514 = vmatpush1.bf16.msra.mxu0 0
        %515 = vmatprep.subr.bf16.mxu0 0
        %516 = vmatpush1.bf16.msra.mxu0 0
        %517 = vmatprep.subr.bf16.mxu0 0
        %518 = vmatpush1.bf16.msra.mxu0 0
        %519 = vmatprep.subr.bf16.mxu0 0
        %520 = vmatpush1.bf16.msra.mxu0 0
        %521 = vmatprep.subr.bf16.mxu0 0
        %522 = vmatpush1.bf16.msra.mxu0 0
        %523 = vmatprep.subr.bf16.mxu0 0
        %524 = vmatpush1.bf16.msra.mxu0 0
        %525 = vmatprep.subr.bf16.mxu0 0
        %526 = vmatpush1.bf16.msra.mxu0 0
        %527 = vmatprep.subr.bf16.mxu0 0
        %528 = vmatpush1.bf16.msra.mxu0 0
        %529 = vmatprep.subr.bf16.mxu0 0
        %530 = vmatpush1.bf16.msra.mxu0 0
        %531 = vmatprep.subr.bf16.mxu0 0
        %532 = vmatpush1.bf16.msra.mxu0 0
        %533 = vmatprep.mubr.bf16.mxu0 0
        %534 = vmatmul.mubr.bf16.gmra.mrb[0].mxu0 %v436
        %v535 = vpop.f32.mrb[0].mxu0
        %v536 = vadd.f32 %v487, %v535
        %v537 = vpop.f32.mrb[0].mxu0
        %v538 = vpop.f32.mrb[0].mxu0
        %v539 = vpop.f32.mrb[0].mxu0
        %540 = vdwg.mxu0
        %541 = vxpose.xlu0.b32.start [1/16] %v473, 128
        %542 = vxpose.xlu0.b32.cont [2/16] 0.0, 128
        %543 = vxpose.xlu0.b32.cont [3/16] 0.0, 128
        %544 = vxpose.xlu0.b32.cont [4/16] 0.0, 128
        %545 = vxpose.xlu0.b32.cont [5/16] 0.0, 128
        %546 = vxpose.xlu0.b32.cont [6/16] 0.0, 128
        %547 = vxpose.xlu0.b32.cont [7/16] 0.0, 128
        %548 = vxpose.xlu0.b32.cont [8/16] 0.0, 128
        %549 = vxpose.xlu0.b32.cont [9/16] 0.0, 128
        %550 = vxpose.xlu0.b32.cont [10/16] 0.0, 128
        %551 = vxpose.xlu0.b32.cont [11/16] 0.0, 128
        %552 = vxpose.xlu0.b32.cont [12/16] 0.0, 128
        %553 = vxpose.xlu0.b32.cont [13/16] 0.0, 128
        %554 = vxpose.xlu0.b32.cont [14/16] 0.0, 128
        %555 = vxpose.xlu0.b32.cont [15/16] 0.0, 128
        %556 = vxpose.xlu0.b32.end [16/16] 0.0, 128
        %v557 = vpop.trf.xlu0
        %v558 = vpop.trf.xlu0
        %v559 = vpop.trf.xlu0
        %v560 = vpop.trf.xlu0
        %v561 = vpop.trf.xlu0
        %v562 = vpop.trf.xlu0
        %v563 = vpop.trf.xlu0
        %v564 = vpop.trf.xlu0
        %v565 = vpop.trf.xlu0
        %v566 = vpop.trf.xlu0
        %v567 = vpop.trf.xlu0
        %v568 = vpop.trf.xlu0
        %v569 = vpop.trf.xlu0
        %v570 = vpop.trf.xlu0
        %v571 = vpop.trf.xlu0
        %v572 = vpop.trf.xlu0
        %v573 = vpack.c.bf16 %v557, %v557
        %v574 = vpack.c.bf16 %v558, %v558
        %v575 = vpack.c.bf16 %v559, %v559
        %v576 = vpack.c.bf16 %v560, %v560
        %vm577 = vcmask 60416
        %578 = vst.msk [vmem:[%s370] sm:$0xf] %vm577, %v573
        %579 = vst.msk [vmem:[%s370 + $0x4] sm:$0xf] %vm577, %v574
        %580 = vst.msk [vmem:[%s370 + $0x8] sm:$0xf] %vm577, %v575
        %581 = vst.msk [vmem:[%s370 + $0xc] sm:$0xf] %vm577, %v576
        %583 = vrot.lane.b32.xlu0 %v536, 120
        %v584 = vpop.permute.xlu0 %583
        %586 = vrot.lane.b32.xlu0 %v536, 112
        %v587 = vpop.permute.xlu0 %586
        %589 = vrot.lane.b32.xlu0 %v536, 104
        %v590 = vpop.permute.xlu0 %589
        %v592 = vcombine.low %v536, %v587
        %v593 = vcombine.high %v536, %v587
        %v595 = vunpack.c.l.s4 1983009808
        %v596 = vunpack.c.0.s8 %v595
        %v597 = vlaneseq
        %v598 = vshrl.u32 %v597, 7
        %v599 = vsub.s32 %v596, %v598
        %v600 = vrot.slane %v592, %v599
        %v602 = vunpack.c.l.s4 1983009808
        %v603 = vunpack.c.0.s8 %v602
        %v604 = vlaneseq
        %v605 = vshrl.u32 %v604, 7
        %v606 = vsub.s32 %v603, %v605
        %v607 = vrot.slane %v593, %v606
        %v608 = vcombine.low %v584, %v590
        %v609 = vcombine.high %v584, %v590
        %v611 = vunpack.c.l.s4 1983009808
        %v612 = vunpack.c.0.s8 %v611
        %v613 = vlaneseq
        %v614 = vshrl.u32 %v613, 7
        %v615 = vsub.s32 %v612, %v614
        %v616 = vrot.slane %v608, %v615
        %v618 = vunpack.c.l.s4 1983009808
        %v619 = vunpack.c.0.s8 %v618
        %v620 = vlaneseq
        %v621 = vshrl.u32 %v620, 7
        %v622 = vsub.s32 %v619, %v621
        %v623 = vrot.slane %v609, %v622
        %v624 = vcombine.low %v600, %v616
        %v625 = vcombine.high %v600, %v616
        %v627 = vunpack.c.l.s4 1934713408
        %v628 = vunpack.c.0.s8 %v627
        %v629 = vlaneseq
        %v630 = vshrl.u32 %v629, 7
        %v631 = vsub.s32 %v628, %v630
        %v632 = vrot.slane %v624, %v631
        %v634 = vunpack.c.l.s4 1934713408
        %v635 = vunpack.c.0.s8 %v634
        %v636 = vlaneseq
        %v637 = vshrl.u32 %v636, 7
        %v638 = vsub.s32 %v635, %v637
        %v639 = vrot.slane %v625, %v638
        %v640 = vcombine.low %v607, %v623
        %v641 = vcombine.high %v607, %v623
        %v643 = vunpack.c.l.s4 1934713408
        %v644 = vunpack.c.0.s8 %v643
        %v645 = vlaneseq
        %v646 = vshrl.u32 %v645, 7
        %v647 = vsub.s32 %v644, %v646
        %v648 = vrot.slane %v640, %v647
        %v650 = vunpack.c.l.s4 1934713408
        %v651 = vunpack.c.0.s8 %v650
        %v652 = vlaneseq
        %v653 = vshrl.u32 %v652, 7
        %v654 = vsub.s32 %v651, %v653
        %v655 = vrot.slane %v641, %v654
        %v656 = vcombine.high %v632, 0.0
        %v657 = vcombine.high %v639, 0.0
        %v658 = vcombine.high %v648, 0.0
        %v659 = vcombine.high %v655, 0.0
        %v660 = vcombine.low %v632, %v639
        %v662 = vunpack.c.l.s4 1983009808
        %v663 = vunpack.c.0.s8 %v662
        %v664 = vlaneseq
        %v665 = vshrl.u32 %v664, 7
        %v666 = vsub.s32 %v663, %v665
        %v667 = vrot.slane %v660, %v666
        %v668 = vcombine.low %v656, %v657
        %v670 = vunpack.c.l.s4 1983009808
        %v671 = vunpack.c.0.s8 %v670
        %v672 = vlaneseq
        %v673 = vshrl.u32 %v672, 7
        %v674 = vsub.s32 %v671, %v673
        %v675 = vrot.slane %v668, %v674
        %v676 = vcombine.low %v648, %v655
        %v678 = vunpack.c.l.s4 1983009808
        %v679 = vunpack.c.0.s8 %v678
        %v680 = vlaneseq
        %v681 = vshrl.u32 %v680, 7
        %v682 = vsub.s32 %v679, %v681
        %v683 = vrot.slane %v676, %v682
        %v684 = vcombine.low %v658, %v659
        %v686 = vunpack.c.l.s4 1983009808
        %v687 = vunpack.c.0.s8 %v686
        %v688 = vlaneseq
        %v689 = vshrl.u32 %v688, 7
        %v690 = vsub.s32 %v687, %v689
        %v691 = vrot.slane %v684, %v690
        %v692 = vcombine.low %v667, %v675
        %v693 = vcombine.high %v667, %v675
        %v695 = vunpack.c.l.s4 1934713408
        %v696 = vunpack.c.0.s8 %v695
        %v697 = vlaneseq
        %v698 = vshrl.u32 %v697, 7
        %v699 = vsub.s32 %v696, %v698
        %v700 = vrot.slane %v692, %v699
        %v702 = vunpack.c.l.s4 1934713408
        %v703 = vunpack.c.0.s8 %v702
        %v704 = vlaneseq
        %v705 = vshrl.u32 %v704, 7
        %v706 = vsub.s32 %v703, %v705
        %v707 = vrot.slane %v693, %v706
        %v708 = vcombine.low %v683, %v691
        %v709 = vcombine.high %v683, %v691
        %v711 = vunpack.c.l.s4 1934713408
        %v712 = vunpack.c.0.s8 %v711
        %v713 = vlaneseq
        %v714 = vshrl.u32 %v713, 7
        %v715 = vsub.s32 %v712, %v714
        %v716 = vrot.slane %v708, %v715
        %v718 = vunpack.c.l.s4 1934713408
        %v719 = vunpack.c.0.s8 %v718
        %v720 = vlaneseq
        %v721 = vshrl.u32 %v720, 7
        %v722 = vsub.s32 %v719, %v721
        %v723 = vrot.slane %v709, %v722
        %v724 = vcombine.low %v700, %v716
        %v725 = vcombine.high %v700, %v716
        %v726 = vcombine.low %v707, %v723
        %v727 = vcombine.high %v707, %v723
        %v728 = vpack.c.bf16 %v724, %v724
        %v729 = vpack.c.bf16 %v725, %v725
        %v730 = vpack.c.bf16 %v726, %v726
        %v731 = vpack.c.bf16 %v727, %v727
        %732 = vst.msk [vmem:[%s377] sm:$0xf] %vm577, %v728
        %733 = vst.msk [vmem:[%s377 + $0x4] sm:$0xf] %vm577, %v729
        %734 = vst.msk [vmem:[%s377 + $0x8] sm:$0xf] %vm577, %v730
        %735 = vst.msk [vmem:[%s377 + $0xc] sm:$0xf] %vm577, %v731
        %s736 = sand.u32 %s206, 1
        %s737 = scalar_lea.sflag [#allocation4], %s736
        %s738 = sand.u32 %s206, 1
        %s739 = smul.addr %s738, 16
        %s740 = scalar_lea.vmem [#allocation8], %s739
        %s741 = sand.u32 %s234, 1
        %s742 = scalar_lea.sflag [#allocation10], %s741
        %s743 = sand.u32 %s234, 1
        %s744 = smul.addr %s743, 16
        %s745 = scalar_lea.vmem [#allocation9], %s744
        // Predicated region
        $region61: #{tpu_custom_call.1} parent=47 // pred_check
          %p746 = pneg %p216
        $region62: #{tpu_custom_call.1} parent=47 // pred_check_branch
          %748 = sbr.rel (%p746) target = $region64
        $region63: #{tpu_custom_call.1} parent=47 // pred_region
          %s750 = ssub.s32 256, 256
          %751 = vsyncadd %s737, %s750
          %s752 = smul.addr %s34, 4
          %s753 = sadd.s32 %s35, %s752
          %s754 = smul.addr %s753, 64
          %s755 = scalar_lea.hbm %s7, %s754
          %s756 = sshll.u32 %s740, 4
          %s757 = int_to_ptr.vmem [resolvable:$true] %s756
          %762 = dma.vmem_to_hbm [thread:$0]  %s757, 256, %s755, %s737, 64, 64, 4
        $region64: #{tpu_custom_call.1} parent=47 // pred_fallthru
          _
        // Predicated region
        $region65: #{tpu_custom_call.1} parent=47 // pred_check
          %p763 = pneg %p244
        $region66: #{tpu_custom_call.1} parent=47 // pred_check_branch
          %765 = sbr.rel (%p763) target = $region68
        $region67: #{tpu_custom_call.1} parent=47 // pred_region
          %s767 = ssub.s32 256, 256
          %768 = vsyncadd %s742, %s767
          %s769 = smul.addr %s34, 4
          %s770 = sadd.s32 %s35, %s769
          %s771 = smul.addr %s770, 64
          %s772 = scalar_lea.hbm %s8, %s771
          %s773 = sshll.u32 %s745, 4
          %s774 = int_to_ptr.vmem [resolvable:$true] %s773
          %779 = dma.vmem_to_hbm [thread:$0]  %s774, 256, %s772, %s742, 64, 64, 4
        $region68: #{tpu_custom_call.1} parent=47 // pred_fallthru
          _
      $region48: #{tpu_custom_call.1} parent=5 // pred_fallthru
        _
      %p780 = scmp.le.s32.totalorder 2, %s25
      // Predicated region
      $region69: #{tpu_custom_call.1} parent=5 // pred_check
        %p781 = pneg %p780
      $region70: #{tpu_custom_call.1} parent=5 // pred_check_branch
        %783 = sbr.rel (%p781) target = $region72
      $region71: #{tpu_custom_call.1} parent=5 // pred_region
        %s784 = ssub.s32 %s25, 2
        // Predicated region
        $region73: #{tpu_custom_call.1} parent=71 // pred_check
          %p785 = pneg %p222
        $region74: #{tpu_custom_call.1} parent=71 // pred_check_branch
          %787 = sbr.rel (%p785) target = $region76
        $region75: #{tpu_custom_call.1} parent=71 // pred_region
          %s788 = sand.u32 %s207, 1
          %s789 = scalar_lea.sflag [#allocation4], %s788
          %s790 = sand.u32 %s207, 1
          %s791 = smul.addr %s790, 16
          %s792 = scalar_lea.vmem [#allocation8], %s791
          %793 = dma.done %s789, 256
        $region76: #{tpu_custom_call.1} parent=71 // pred_fallthru
          _
        // Predicated region
        $region77: #{tpu_custom_call.1} parent=71 // pred_check
          %p794 = pneg %p250
        $region78: #{tpu_custom_call.1} parent=71 // pred_check_branch
          %796 = sbr.rel (%p794) target = $region80
        $region79: #{tpu_custom_call.1} parent=71 // pred_region
          %s797 = sand.u32 %s235, 1
          %s798 = scalar_lea.sflag [#allocation10], %s797
          %s799 = sand.u32 %s235, 1
          %s800 = smul.addr %s799, 16
          %s801 = scalar_lea.vmem [#allocation9], %s800
          %802 = dma.done %s798, 256
        $region80: #{tpu_custom_call.1} parent=71 // pred_fallthru
          _
      $region72: #{tpu_custom_call.1} parent=5 // pred_fallthru
        _
    $region6: #{tpu_custom_call.1} parent=1 // loop_footer
      %s29 = sadd.s32 1, %s25
    $region7: #{tpu_custom_call.1} parent=1 // loop_footer_branch
      %24 = sbr.rel target = $region3
    $region8: #{tpu_custom_call.1} parent=1 // loop_exit
      _
    %803 = vsyncpa [#allocation3], 1
    %s804 = scalar_lea.sflag [#allocation3], 1
    %805 = vsyncpa %s804, 1
    %806 = vsyncpa [#allocation6], 1
    %807 = vsyncpa [#allocation4], 1
    %s808 = scalar_lea.sflag [#allocation4], 1
    %809 = vsyncpa %s808, 1
    %810 = vsyncpa [#allocation10], 1
    %s811 = scalar_lea.sflag [#allocation10], 1
    %812 = vsyncpa %s811, 1

</llo_original>
